<compile_context>
chip_gen: v7x
topology: tpu7x:2x2x1
jax: 0.10.0
libtpu: 0.0.40
codegen_flags: <defaults>
</compile_context>

<pallas_src>
import jax
import jax.numpy as jnp
from jax.experimental import pallas as pl
from jax.experimental.pallas import tpu as pltpu


def _round_up(v, m):
    return ((v + m - 1) // m) * m


def _tpu_info():
    """Return (physical VMEM bytes per core, multi-TensorCore flag, device kind)."""
    vmem_cap = None
    try:
        info = pltpu.get_tpu_info()
        cap = int(getattr(info, "vmem_capacity_bytes", 0) or 0)
        if cap > 0:
            vmem_cap = cap
    except Exception:
        vmem_cap = None
    kind = ""
    try:
        kind = jax.devices()[0].device_kind.lower()
    except Exception:
        kind = ""
    if vmem_cap is None:
        # Conservative fallback that is legal on every generation (v7x = 64 MiB).
        vmem_cap = 64 * 1024 * 1024
    multi_core = "v7" in kind  # v7x has 2 TensorCores per chip
    return vmem_cap, multi_core, kind


def _cae_kernel(x_ref,
                w1_ref, b1_ref,
                w2_ref, b2_ref,
                w3_ref, b3_ref,
                w4_ref, b4_ref,
                latent_ref, decoded_ref):
    """Fused 4-layer MLP autoencoder forward for one batch tile.

    All four matmuls hit the MXU with f32 accumulation; sigmoid and bias adds
    run in f32 (safe on v5e which lacks bf16 VPU/EUP).  Activations feeding the
    next matmul are cast to the matmul operand dtype immediately to shrink f32
    intermediates when bf16 operands are used.
    """
    mdt = w1_ref.dtype  # matmul operand dtype (f32 or bf16)

    x = x_ref[...].astype(mdt)

    # encoder
    h1 = jax.nn.sigmoid(
        jnp.dot(x, w1_ref[...], preferred_element_type=jnp.float32)
        + b1_ref[...]).astype(mdt)
    latent = jax.nn.sigmoid(
        jnp.dot(h1, w2_ref[...], preferred_element_type=jnp.float32) + b2_ref[...])
    latent_ref[...] = latent.astype(latent_ref.dtype)

    # decoder
    h2 = jax.nn.sigmoid(
        jnp.dot(latent.astype(mdt), w3_ref[...],
                preferred_element_type=jnp.float32) + b3_ref[...]).astype(mdt)
    decoded = jax.nn.sigmoid(
        jnp.dot(h2, w4_ref[...], preferred_element_type=jnp.float32) + b4_ref[...])
    decoded_ref[...] = decoded.astype(decoded_ref.dtype)


def _choose_batch_tile(B, per_row_bytes, fixed_bytes, budget_bytes,
                       row_align, multi_core):
    """Largest aligned tile fitting the VMEM data budget (cap 1024 rows)."""
    B_a = _round_up(B, row_align)
    avail = max(budget_bytes - fixed_bytes, 0)
    fit = max(avail // max(per_row_bytes, 1), row_align)
    tile = max(row_align, min(1024, B_a, (fit // row_align) * row_align))
    # Only on multi-TC chips (v7x): prefer >= 2 grid steps so both cores get work.
    if multi_core and B_a >= 2 * row_align:
        tile = min(tile, _round_up((B_a + 1) // 2, row_align))
    return int(tile)


def cae_forward(x, params, *, batch_tile=None, matmul_dtype="auto",
                data_vmem_budget=None, vmem_limit_bytes=None):
    """Run the CAE forward pass as a single fused Pallas kernel.

    x:      (B, input_size)
    params: dict with w1..w4 stored as (in, out) and b1..b4 stored as (1, out)
    returns (latent, decoded) with the same dtype as x.
    """
    orig_dtype = x.dtype
    B, input_size = x.shape
    hidden_size = params["w1"].shape[1]
    latent_size = params["w2"].shape[1]

    vmem_cap, multi_core, device_kind = _tpu_info()

    # ---- generation-aware VMEM budgets ----
    if vmem_limit_bytes is None:
        headroom = (32 << 20) if vmem_cap >= (128 << 20) else (16 << 20)
        vmem_limit_bytes = max(vmem_cap - headroom, 16 << 20)   # ~96 MiB v5e/v6e, ~48 MiB v7x
    if data_vmem_budget is None:
        data_vmem_budget = max(vmem_cap // 2, 8 << 20)          # ~64 MiB v5e/v6e, ~32 MiB v7x

    # ---- generation-aware matmul operand dtype ----
    if isinstance(matmul_dtype, str) and matmul_dtype == "auto":
        # bf16 operands (f32 accumulate) on v6e/v7x; exact f32 on v5e / unknown.
        matmul_dtype = jnp.bfloat16 if ("v6" in device_kind or "v7" in device_kind) else None
        # TODO(synk): fp8 weights on v7x for very large hidden sizes.

    # ---- pad feature dims to 128 lanes (lane-dense MXU shapes & stores) ----
    in_p = _round_up(input_size, 128)
    hid_p = _round_up(hidden_size, 128)
    lat_p = _round_up(latent_size, 128)

    def pad2(a, r, c):
        if a.shape == (r, c):
            return a
        return jnp.pad(a, ((0, r - a.shape[0]), (0, c - a.shape[1])))

    w1 = pad2(params["w1"], in_p, hid_p)
    b1 = pad2(params["b1"], 1, hid_p).astype(jnp.float32)
    w2 = pad2(params["w2"], hid_p, lat_p)
    b2 = pad2(params["b2"], 1, lat_p).astype(jnp.float32)
    w3 = pad2(params["w3"], lat_p, hid_p)
    b3 = pad2(params["b3"], 1, hid_p).astype(jnp.float32)
    w4 = pad2(params["w4"], hid_p, in_p)
    b4 = pad2(params["b4"], 1, in_p).astype(jnp.float32)

    x_mm = x
    if matmul_dtype is not None:
        x_mm = x.astype(matmul_dtype)
        w1, w2, w3, w4 = (w.astype(matmul_dtype) for w in (w1, w2, w3, w4))

    wsz = jnp.dtype(w1.dtype).itemsize
    xsz = jnp.dtype(x_mm.dtype).itemsize
    osz = jnp.dtype(orig_dtype).itemsize

    weight_bytes = wsz * (in_p * hid_p + hid_p * lat_p + lat_p * hid_p + hid_p * in_p)
    bias_bytes = 4 * (hid_p + lat_p + hid_p + in_p)

    # TODO(synk): add a K/N-tiled accumulator path (extra grid axis over the
    # reduction dim with pl.when init/finalize) for weights exceeding VMEM.
    if weight_bytes + bias_bytes >= data_vmem_budget:
        raise ValueError(
            "CAE weights (%.1f MiB) do not fit the VMEM data budget (%.1f MiB); "
            "pass matmul_dtype=jnp.bfloat16 or reduce the model size."
            % ((weight_bytes + bias_bytes) / 2**20, data_vmem_budget / 2**20))

    # Sub-32-bit dtypes pack along sublanes: bf16 needs 16-row, 1-byte 32-row tiles.
    min_itemsize = min(xsz, osz)
    row_align = max(8, 32 // max(min_itemsize, 1))

    if batch_tile is not None and batch_tile % row_align != 0:
        raise ValueError("batch_tile must be a multiple of %d for the dtypes used"
                         % row_align)

    # Per-row VMEM bytes (x tile + output tiles double-buffered, f32 intermediates).
    per_row_bytes = (2 * xsz * in_p
                     + 2 * osz * (lat_p + in_p)
                     + 4 * (2 * hid_p + lat_p + in_p))

    flops = 2 * (in_p * hid_p + hid_p * lat_p + lat_p * hid_p + hid_p * in_p)
    transc = 2 * hid_p + lat_p + in_p

    def _attempt(weight_buffers):
        fixed_bytes = weight_buffers * (weight_bytes + bias_bytes)

        if batch_tile is None:
            tile = _choose_batch_tile(B, per_row_bytes, fixed_bytes,
                                      data_vmem_budget, row_align, multi_core)
        else:
            tile = int(batch_tile)

        B_pad = _round_up(B, tile)
        xw = x_mm
        if B_pad != B or in_p != input_size:
            xw = jnp.pad(x_mm, ((0, B_pad - B), (0, in_p - input_size)))

        grid = (B_pad // tile,)

        # Weights/biases are grid-invariant: single-buffer them when allowed.
        if weight_buffers == 1:
            def wspec(shape):
                return pl.BlockSpec(shape, lambda i: (0, 0),
                                    pipeline_mode=pl.Buffered(1))
        else:
            def wspec(shape):
                return pl.BlockSpec(shape, lambda i: (0, 0))

        in_specs = [
            pl.BlockSpec((tile, in_p), lambda i: (i, 0)),  # x
            wspec(w1.shape), wspec(b1.shape),
            wspec(w2.shape), wspec(b2.shape),
            wspec(w3.shape), wspec(b3.shape),
            wspec(w4.shape), wspec(b4.shape),
        ]
        out_specs = [
            pl.BlockSpec((tile, lat_p), lambda i: (i, 0)),
            pl.BlockSpec((tile, in_p), lambda i: (i, 0)),
        ]
        out_shape = [
            jax.ShapeDtypeStruct((B_pad, lat_p), orig_dtype),
            jax.ShapeDtypeStruct((B_pad, in_p), orig_dtype),
        ]

        cost = pl.CostEstimate(
            flops=int(B_pad * flops),
            transcendentals=int(B_pad * transc),
            bytes_accessed=int(B_pad * in_p * xsz + weight_bytes + bias_bytes
                               + B_pad * (lat_p + in_p) * osz),
        )

        fn = pl.pallas_call(
            _cae_kernel,
            grid=grid,
            in_specs=in_specs,
            out_specs=out_specs,
            out_shape=out_shape,
            cost_estimate=cost,
            compiler_params=pltpu.CompilerParams(
                dimension_semantics=("parallel",),
                vmem_limit_bytes=int(vmem_limit_bytes)),
        )
        latent_p, decoded_p = fn(xw, w1, b1, w2, b2, w3, b3, w4, b4)

        # Strip batch / lane padding (skip the slice when already tight).
        latent = latent_p if (B_pad == B and lat_p == latent_size) \
            else latent_p[:B, :latent_size]
        decoded = decoded_p if (B_pad == B and in_p == input_size) \
            else decoded_p[:B, :input_size]
        return latent, decoded

    try:
        return _attempt(1)          # single-buffered grid-invariant weights
    except Exception:
        return _attempt(2)          # fallback: default double-buffering


def init_cae_params(key, input_size, hidden_size, latent_size, dtype=jnp.float32):
    """Deterministic init. Weights stored as (in, out) = PyTorch weight.T."""
    ks = jax.random.split(key, 8)

    def linear(kw, kb, fan_in, fan_out):
        # Mimic torch.nn.Linear default init: U(-1/sqrt(fan_in), 1/sqrt(fan_in))
        bound = 1.0 / jnp.sqrt(jnp.float32(fan_in))
        w = jax.random.uniform(kw, (fan_in, fan_out), dtype, -bound, bound)
        b = jax.random.uniform(kb, (1, fan_out), dtype, -bound, bound)
        return w, b

    w1, b1 = linear(ks[0], ks[1], input_size, hidden_size)
    w2, b2 = linear(ks[2], ks[3], hidden_size, latent_size)
    w3, b3 = linear(ks[4], ks[5], latent_size, hidden_size)
    w4, b4 = linear(ks[6], ks[7], hidden_size, input_size)
    return dict(w1=w1, b1=b1, w2=w2, b2=b2, w3=w3, b3=b3, w4=w4, b4=b4)


def cae_forward_ref(x, p):
    """Pure-JAX reference for correctness checking."""
    h1 = jax.nn.sigmoid(x @ p["w1"] + p["b1"])
    latent = jax.nn.sigmoid(h1 @ p["w2"] + p["b2"])
    h2 = jax.nn.sigmoid(latent @ p["w3"] + p["b3"])
    decoded = jax.nn.sigmoid(h2 @ p["w4"] + p["b4"])
    return latent, decoded


if __name__ == "__main__":
    key = jax.random.PRNGKey(0)
    k_x, k_p = jax.random.split(key)

    B, input_size, hidden_size, latent_size = 8, 64, 32, 16
    x = jax.random.normal(k_x, (B, input_size), jnp.float32)
    params = init_cae_params(k_p, input_size, hidden_size, latent_size)

    latent_ref_v, decoded_ref_v = cae_forward_ref(x, params)

    # Exact f32 path.
    latent, decoded = cae_forward(x, params, matmul_dtype=jnp.float32)
    jax.block_until_ready((latent, decoded))
    assert latent.shape == (B, latent_size)
    assert decoded.shape == (B, input_size)
    assert jnp.allclose(latent, latent_ref_v, atol=1e-5, rtol=1e-5)
    assert jnp.allclose(decoded, decoded_ref_v, atol=1e-5, rtol=1e-5)

    # Default path (generation-aware: bf16 MXU operands on v6e/v7x, f32 elsewhere).
    lat_d, dec_d = cae_forward(x, params)
    jax.block_until_ready((lat_d, dec_d))
    assert jnp.allclose(lat_d, latent_ref_v, atol=2e-2)
    assert jnp.allclose(dec_d, decoded_ref_v, atol=2e-2)

    # Explicit bf16-operand MXU path (f32 accumulate) — looser tolerance.
    lat_bf, dec_bf = cae_forward(x, params, matmul_dtype=jnp.bfloat16)
    jax.block_until_ready((lat_bf, dec_bf))
    assert jnp.allclose(lat_bf, latent_ref_v, atol=2e-2)
    assert jnp.allclose(dec_bf, decoded_ref_v, atol=2e-2)

    # Non-multiple-of-8 batch exercising batch padding + multi-step grid.
    B2 = 100
    x2 = jax.random.normal(k_x, (B2, input_size), jnp.float32)
    lat2, dec2 = cae_forward(x2, params, matmul_dtype=jnp.float32)
    jax.block_until_ready((lat2, dec2))
    lat2_ref, dec2_ref = cae_forward_ref(x2, params)
    assert lat2.shape == (B2, latent_size)
    assert dec2.shape == (B2, input_size)
    assert jnp.allclose(lat2, lat2_ref, atol=1e-5, rtol=1e-5)
    assert jnp.allclose(dec2, dec2_ref, atol=1e-5, rtol=1e-5)

    print("KERNEL_OK")
</pallas_src>

<mosaic_0001>
module attributes {stable_mosaic.version = 11 : i64} {
  func.func @_cae_kernel(%arg0: i32, %arg1: memref<8x128xf32, #tpu.memory_space<vmem>>, %arg2: memref<128x128xf32, #tpu.memory_space<vmem>>, %arg3: memref<1x128xf32, #tpu.memory_space<vmem>>, %arg4: memref<128x128xf32, #tpu.memory_space<vmem>>, %arg5: memref<1x128xf32, #tpu.memory_space<vmem>>, %arg6: memref<128x128xf32, #tpu.memory_space<vmem>>, %arg7: memref<1x128xf32, #tpu.memory_space<vmem>>, %arg8: memref<128x128xf32, #tpu.memory_space<vmem>>, %arg9: memref<1x128xf32, #tpu.memory_space<vmem>>, %arg10: memref<8x128xf32, #tpu.memory_space<vmem>>, %arg11: memref<8x128xf32, #tpu.memory_space<vmem>>) attributes {dimension_semantics = [#tpu.dimension_semantics<parallel>], iteration_bounds = array<i64: 1>, scalar_prefetch = 0 : i64, scratch_operands = 0 : i64, tpu.core_type = #tpu.core_type<tc>, window_params = [{transform_indices = @transform_0, window_bounds = array<i64: 8, 128>}, {pipeline_mode = #tpu.pipeline_mode<synchronous>, transform_indices = @transform_1, window_bounds = array<i64: 128, 128>}, {pipeline_mode = #tpu.pipeline_mode<synchronous>, transform_indices = @transform_2, window_bounds = array<i64: 1, 128>}, {pipeline_mode = #tpu.pipeline_mode<synchronous>, transform_indices = @transform_3, window_bounds = array<i64: 128, 128>}, {pipeline_mode = #tpu.pipeline_mode<synchronous>, transform_indices = @transform_4, window_bounds = array<i64: 1, 128>}, {pipeline_mode = #tpu.pipeline_mode<synchronous>, transform_indices = @transform_5, window_bounds = array<i64: 128, 128>}, {pipeline_mode = #tpu.pipeline_mode<synchronous>, transform_indices = @transform_6, window_bounds = array<i64: 1, 128>}, {pipeline_mode = #tpu.pipeline_mode<synchronous>, transform_indices = @transform_7, window_bounds = array<i64: 128, 128>}, {pipeline_mode = #tpu.pipeline_mode<synchronous>, transform_indices = @transform_8, window_bounds = array<i64: 1, 128>}, {transform_indices = @transform_9, window_bounds = array<i64: 8, 128>}, {transform_indices = @transform_10, window_bounds = array<i64: 8, 128>}]} {
    %c0 = arith.constant 0 : index
    %c0_0 = arith.constant 0 : index
    %0 = vector.load %arg1[%c0, %c0_0] : memref<8x128xf32, #tpu.memory_space<vmem>>, vector<8x128xf32>
    %c0_1 = arith.constant 0 : index
    %c0_2 = arith.constant 0 : index
    %1 = vector.load %arg2[%c0_1, %c0_2] : memref<128x128xf32, #tpu.memory_space<vmem>>, vector<128x128xf32>
    %cst = arith.constant dense<0.000000e+00> : vector<8x128xf32>
    %2 = tpu.matmul %0, %1, %cst {dimension_numbers = #tpu.dot_dimension_numbers<[1], [0], [0], [1], [0, 0, 1, 1], [], []>} : vector<8x128xf32>, vector<128x128xf32>, vector<8x128xf32> -> vector<8x128xf32>
    %c0_3 = arith.constant 0 : index
    %c0_4 = arith.constant 0 : index
    %3 = vector.load %arg3[%c0_3, %c0_4] : memref<1x128xf32, #tpu.memory_space<vmem>>, vector<1x128xf32>
    %4 = vector.broadcast %3 : vector<1x128xf32> to vector<8x128xf32>
    %5 = arith.addf %2, %4 : vector<8x128xf32>
    %6 = arith.negf %5 : vector<8x128xf32>
    %7 = math.exp %6 : vector<8x128xf32>
    %cst_5 = arith.constant 1.000000e+00 : f32
    %8 = vector.broadcast %cst_5 : f32 to vector<8x128xf32>
    %9 = arith.addf %8, %7 : vector<8x128xf32>
    %10 = arith.divf %8, %9 : vector<8x128xf32>
    %c0_6 = arith.constant 0 : index
    %c0_7 = arith.constant 0 : index
    %11 = vector.load %arg4[%c0_6, %c0_7] : memref<128x128xf32, #tpu.memory_space<vmem>>, vector<128x128xf32>
    %cst_8 = arith.constant dense<0.000000e+00> : vector<8x128xf32>
    %12 = tpu.matmul %10, %11, %cst_8 {dimension_numbers = #tpu.dot_dimension_numbers<[1], [0], [0], [1], [0, 0, 1, 1], [], []>} : vector<8x128xf32>, vector<128x128xf32>, vector<8x128xf32> -> vector<8x128xf32>
    %c0_9 = arith.constant 0 : index
    %c0_10 = arith.constant 0 : index
    %13 = vector.load %arg5[%c0_9, %c0_10] : memref<1x128xf32, #tpu.memory_space<vmem>>, vector<1x128xf32>
    %14 = vector.broadcast %13 : vector<1x128xf32> to vector<8x128xf32>
    %15 = arith.addf %12, %14 : vector<8x128xf32>
    %16 = arith.negf %15 : vector<8x128xf32>
    %17 = math.exp %16 : vector<8x128xf32>
    %cst_11 = arith.constant 1.000000e+00 : f32
    %18 = vector.broadcast %cst_11 : f32 to vector<8x128xf32>
    %19 = arith.addf %18, %17 : vector<8x128xf32>
    %20 = arith.divf %18, %19 : vector<8x128xf32>
    %c0_12 = arith.constant 0 : index
    %c0_13 = arith.constant 0 : index
    %21 = vector.load %arg10[%c0_12, %c0_13] : memref<8x128xf32, #tpu.memory_space<vmem>>, vector<8x128xf32>
    tpu.vector_store %arg10[%c0_12, %c0_13], %20 {strides = array<i32>} : memref<8x128xf32, #tpu.memory_space<vmem>>, vector<8x128xf32>,
    %c0_14 = arith.constant 0 : index
    %c0_15 = arith.constant 0 : index
    %22 = vector.load %arg6[%c0_14, %c0_15] : memref<128x128xf32, #tpu.memory_space<vmem>>, vector<128x128xf32>
    %cst_16 = arith.constant dense<0.000000e+00> : vector<8x128xf32>
    %23 = tpu.matmul %20, %22, %cst_16 {dimension_numbers = #tpu.dot_dimension_numbers<[1], [0], [0], [1], [0, 0, 1, 1], [], []>} : vector<8x128xf32>, vector<128x128xf32>, vector<8x128xf32> -> vector<8x128xf32>
    %c0_17 = arith.constant 0 : index
    %c0_18 = arith.constant 0 : index
    %24 = vector.load %arg7[%c0_17, %c0_18] : memref<1x128xf32, #tpu.memory_space<vmem>>, vector<1x128xf32>
    %25 = vector.broadcast %24 : vector<1x128xf32> to vector<8x128xf32>
    %26 = arith.addf %23, %25 : vector<8x128xf32>
    %27 = arith.negf %26 : vector<8x128xf32>
    %28 = math.exp %27 : vector<8x128xf32>
    %cst_19 = arith.constant 1.000000e+00 : f32
    %29 = vector.broadcast %cst_19 : f32 to vector<8x128xf32>
    %30 = arith.addf %29, %28 : vector<8x128xf32>
    %31 = arith.divf %29, %30 : vector<8x128xf32>
    %c0_20 = arith.constant 0 : index
    %c0_21 = arith.constant 0 : index
    %32 = vector.load %arg8[%c0_20, %c0_21] : memref<128x128xf32, #tpu.memory_space<vmem>>, vector<128x128xf32>
    %cst_22 = arith.constant dense<0.000000e+00> : vector<8x128xf32>
    %33 = tpu.matmul %31, %32, %cst_22 {dimension_numbers = #tpu.dot_dimension_numbers<[1], [0], [0], [1], [0, 0, 1, 1], [], []>} : vector<8x128xf32>, vector<128x128xf32>, vector<8x128xf32> -> vector<8x128xf32>
    %c0_23 = arith.constant 0 : index
    %c0_24 = arith.constant 0 : index
    %34 = vector.load %arg9[%c0_23, %c0_24] : memref<1x128xf32, #tpu.memory_space<vmem>>, vector<1x128xf32>
    %35 = vector.broadcast %34 : vector<1x128xf32> to vector<8x128xf32>
    %36 = arith.addf %33, %35 : vector<8x128xf32>
    %37 = arith.negf %36 : vector<8x128xf32>
    %38 = math.exp %37 : vector<8x128xf32>
    %cst_25 = arith.constant 1.000000e+00 : f32
    %39 = vector.broadcast %cst_25 : f32 to vector<8x128xf32>
    %40 = arith.addf %39, %38 : vector<8x128xf32>
    %41 = arith.divf %39, %40 : vector<8x128xf32>
    %c0_26 = arith.constant 0 : index
    %c0_27 = arith.constant 0 : index
    %42 = vector.load %arg11[%c0_26, %c0_27] : memref<8x128xf32, #tpu.memory_space<vmem>>, vector<8x128xf32>
    tpu.vector_store %arg11[%c0_26, %c0_27], %41 {strides = array<i32>} : memref<8x128xf32, #tpu.memory_space<vmem>>, vector<8x128xf32>,
    return
  }
  func.func @transform_0(%arg0: i32) -> (i32, i32) {
    %c0_i32 = arith.constant 0 : i32
    %c0_i32_0 = arith.constant 0 : i32
    return %arg0, %c0_i32 : i32, i32
  }
  func.func @transform_1(%arg0: i32) -> (i32, i32) {
    %c0_i32 = arith.constant 0 : i32
    %c0_i32_0 = arith.constant 0 : i32
    %c0_i32_1 = arith.constant 0 : i32
    return %c0_i32, %c0_i32_0 : i32, i32
  }
  func.func @transform_2(%arg0: i32) -> (i32, i32) {
    %c0_i32 = arith.constant 0 : i32
    %c0_i32_0 = arith.constant 0 : i32
    %c0_i32_1 = arith.constant 0 : i32
    return %c0_i32, %c0_i32_0 : i32, i32
  }
  func.func @transform_3(%arg0: i32) -> (i32, i32) {
    %c0_i32 = arith.constant 0 : i32
    %c0_i32_0 = arith.constant 0 : i32
    %c0_i32_1 = arith.constant 0 : i32
    return %c0_i32, %c0_i32_0 : i32, i32
  }
  func.func @transform_4(%arg0: i32) -> (i32, i32) {
    %c0_i32 = arith.constant 0 : i32
    %c0_i32_0 = arith.constant 0 : i32
    %c0_i32_1 = arith.constant 0 : i32
    return %c0_i32, %c0_i32_0 : i32, i32
  }
  func.func @transform_5(%arg0: i32) -> (i32, i32) {
    %c0_i32 = arith.constant 0 : i32
    %c0_i32_0 = arith.constant 0 : i32
    %c0_i32_1 = arith.constant 0 : i32
    return %c0_i32, %c0_i32_0 : i32, i32
  }
  func.func @transform_6(%arg0: i32) -> (i32, i32) {
    %c0_i32 = arith.constant 0 : i32
    %c0_i32_0 = arith.constant 0 : i32
    %c0_i32_1 = arith.constant 0 : i32
    return %c0_i32, %c0_i32_0 : i32, i32
  }
  func.func @transform_7(%arg0: i32) -> (i32, i32) {
    %c0_i32 = arith.constant 0 : i32
    %c0_i32_0 = arith.constant 0 : i32
    %c0_i32_1 = arith.constant 0 : i32
    return %c0_i32, %c0_i32_0 : i32, i32
  }
  func.func @transform_8(%arg0: i32) -> (i32, i32) {
    %c0_i32 = arith.constant 0 : i32
    %c0_i32_0 = arith.constant 0 : i32
    %c0_i32_1 = arith.constant 0 : i32
    return %c0_i32, %c0_i32_0 : i32, i32
  }
  func.func @transform_9(%arg0: i32) -> (i32, i32) {
    %c0_i32 = arith.constant 0 : i32
    %c0_i32_0 = arith.constant 0 : i32
    return %arg0, %c0_i32 : i32, i32
  }
  func.func @transform_10(%arg0: i32) -> (i32, i32) {
    %c0_i32 = arith.constant 0 : i32
    %c0_i32_0 = arith.constant 0 : i32
    return %arg0, %c0_i32 : i32, i32
  }
}

module attributes {stable_mosaic.version = 11 : i64} {
  func.func @_cae_kernel(%arg0: i32, %arg1: memref<8x128xf32, #tpu.memory_space<vmem>>, %arg2: memref<128x128xf32, #tpu.memory_space<vmem>>, %arg3: memref<1x128xf32, #tpu.memory_space<vmem>>, %arg4: memref<128x128xf32, #tpu.memory_space<vmem>>, %arg5: memref<1x128xf32, #tpu.memory_space<vmem>>, %arg6: memref<128x128xf32, #tpu.memory_space<vmem>>, %arg7: memref<1x128xf32, #tpu.memory_space<vmem>>, %arg8: memref<128x128xf32, #tpu.memory_space<vmem>>, %arg9: memref<1x128xf32, #tpu.memory_space<vmem>>, %arg10: memref<8x128xf32, #tpu.memory_space<vmem>>, %arg11: memref<8x128xf32, #tpu.memory_space<vmem>>) attributes {dimension_semantics = [#tpu.dimension_semantics<parallel>], iteration_bounds = array<i64: 1>, scalar_prefetch = 0 : i64, scratch_operands = 0 : i64, tpu.core_type = #tpu.core_type<tc>, window_params = [{transform_indices = @transform_0, window_bounds = array<i64: 8, 128>}, {pipeline_mode = #tpu.pipeline_mode<synchronous>, transform_indices = @transform_1, window_bounds = array<i64: 128, 128>}, {pipeline_mode = #tpu.pipeline_mode<synchronous>, transform_indices = @transform_2, window_bounds = array<i64: 1, 128>}, {pipeline_mode = #tpu.pipeline_mode<synchronous>, transform_indices = @transform_3, window_bounds = array<i64: 128, 128>}, {pipeline_mode = #tpu.pipeline_mode<synchronous>, transform_indices = @transform_4, window_bounds = array<i64: 1, 128>}, {pipeline_mode = #tpu.pipeline_mode<synchronous>, transform_indices = @transform_5, window_bounds = array<i64: 128, 128>}, {pipeline_mode = #tpu.pipeline_mode<synchronous>, transform_indices = @transform_6, window_bounds = array<i64: 1, 128>}, {pipeline_mode = #tpu.pipeline_mode<synchronous>, transform_indices = @transform_7, window_bounds = array<i64: 128, 128>}, {pipeline_mode = #tpu.pipeline_mode<synchronous>, transform_indices = @transform_8, window_bounds = array<i64: 1, 128>}, {transform_indices = @transform_9, window_bounds = array<i64: 8, 128>}, {transform_indices = @transform_10, window_bounds = array<i64: 8, 128>}]} {
    %c0 = arith.constant 0 : index
    %c0_0 = arith.constant 0 : index
    %0 = vector.load %arg1[%c0, %c0_0] : memref<8x128xf32, #tpu.memory_space<vmem>>, vector<8x128xf32>
    %c0_1 = arith.constant 0 : index
    %c0_2 = arith.constant 0 : index
    %1 = vector.load %arg2[%c0_1, %c0_2] : memref<128x128xf32, #tpu.memory_space<vmem>>, vector<128x128xf32>
    %cst = arith.constant dense<0.000000e+00> : vector<8x128xf32>
    %2 = tpu.matmul %0, %1, %cst {dimension_numbers = #tpu.dot_dimension_numbers<[1], [0], [0], [1], [0, 0, 1, 1], [], []>} : vector<8x128xf32>, vector<128x128xf32>, vector<8x128xf32> -> vector<8x128xf32>
    %c0_3 = arith.constant 0 : index
    %c0_4 = arith.constant 0 : index
    %3 = vector.load %arg3[%c0_3, %c0_4] : memref<1x128xf32, #tpu.memory_space<vmem>>, vector<1x128xf32>
    %4 = vector.broadcast %3 : vector<1x128xf32> to vector<8x128xf32>
    %5 = arith.addf %2, %4 : vector<8x128xf32>
    %6 = arith.negf %5 : vector<8x128xf32>
    %7 = math.exp %6 : vector<8x128xf32>
    %cst_5 = arith.constant 1.000000e+00 : f32
    %8 = vector.broadcast %cst_5 : f32 to vector<8x128xf32>
    %9 = arith.addf %8, %7 : vector<8x128xf32>
    %10 = arith.divf %8, %9 : vector<8x128xf32>
    %c0_6 = arith.constant 0 : index
    %c0_7 = arith.constant 0 : index
    %11 = vector.load %arg4[%c0_6, %c0_7] : memref<128x128xf32, #tpu.memory_space<vmem>>, vector<128x128xf32>
    %cst_8 = arith.constant dense<0.000000e+00> : vector<8x128xf32>
    %12 = tpu.matmul %10, %11, %cst_8 {dimension_numbers = #tpu.dot_dimension_numbers<[1], [0], [0], [1], [0, 0, 1, 1], [], []>} : vector<8x128xf32>, vector<128x128xf32>, vector<8x128xf32> -> vector<8x128xf32>
    %c0_9 = arith.constant 0 : index
    %c0_10 = arith.constant 0 : index
    %13 = vector.load %arg5[%c0_9, %c0_10] : memref<1x128xf32, #tpu.memory_space<vmem>>, vector<1x128xf32>
    %14 = vector.broadcast %13 : vector<1x128xf32> to vector<8x128xf32>
    %15 = arith.addf %12, %14 : vector<8x128xf32>
    %16 = arith.negf %15 : vector<8x128xf32>
    %17 = math.exp %16 : vector<8x128xf32>
    %cst_11 = arith.constant 1.000000e+00 : f32
    %18 = vector.broadcast %cst_11 : f32 to vector<8x128xf32>
    %19 = arith.addf %18, %17 : vector<8x128xf32>
    %20 = arith.divf %18, %19 : vector<8x128xf32>
    %c0_12 = arith.constant 0 : index
    %c0_13 = arith.constant 0 : index
    %21 = vector.load %arg10[%c0_12, %c0_13] : memref<8x128xf32, #tpu.memory_space<vmem>>, vector<8x128xf32>
    tpu.vector_store %arg10[%c0_12, %c0_13], %20 {strides = array<i32>} : memref<8x128xf32, #tpu.memory_space<vmem>>, vector<8x128xf32>,
    %c0_14 = arith.constant 0 : index
    %c0_15 = arith.constant 0 : index
    %22 = vector.load %arg6[%c0_14, %c0_15] : memref<128x128xf32, #tpu.memory_space<vmem>>, vector<128x128xf32>
    %cst_16 = arith.constant dense<0.000000e+00> : vector<8x128xf32>
    %23 = tpu.matmul %20, %22, %cst_16 {dimension_numbers = #tpu.dot_dimension_numbers<[1], [0], [0], [1], [0, 0, 1, 1], [], []>} : vector<8x128xf32>, vector<128x128xf32>, vector<8x128xf32> -> vector<8x128xf32>
    %c0_17 = arith.constant 0 : index
    %c0_18 = arith.constant 0 : index
    %24 = vector.load %arg7[%c0_17, %c0_18] : memref<1x128xf32, #tpu.memory_space<vmem>>, vector<1x128xf32>
    %25 = vector.broadcast %24 : vector<1x128xf32> to vector<8x128xf32>
    %26 = arith.addf %23, %25 : vector<8x128xf32>
    %27 = arith.negf %26 : vector<8x128xf32>
    %28 = math.exp %27 : vector<8x128xf32>
    %cst_19 = arith.constant 1.000000e+00 : f32
    %29 = vector.broadcast %cst_19 : f32 to vector<8x128xf32>
    %30 = arith.addf %29, %28 : vector<8x128xf32>
    %31 = arith.divf %29, %30 : vector<8x128xf32>
    %c0_20 = arith.constant 0 : index
    %c0_21 = arith.constant 0 : index
    %32 = vector.load %arg8[%c0_20, %c0_21] : memref<128x128xf32, #tpu.memory_space<vmem>>, vector<128x128xf32>
    %cst_22 = arith.constant dense<0.000000e+00> : vector<8x128xf32>
    %33 = tpu.matmul %31, %32, %cst_22 {dimension_numbers = #tpu.dot_dimension_numbers<[1], [0], [0], [1], [0, 0, 1, 1], [], []>} : vector<8x128xf32>, vector<128x128xf32>, vector<8x128xf32> -> vector<8x128xf32>
    %c0_23 = arith.constant 0 : index
    %c0_24 = arith.constant 0 : index
    %34 = vector.load %arg9[%c0_23, %c0_24] : memref<1x128xf32, #tpu.memory_space<vmem>>, vector<1x128xf32>
    %35 = vector.broadcast %34 : vector<1x128xf32> to vector<8x128xf32>
    %36 = arith.addf %33, %35 : vector<8x128xf32>
    %37 = arith.negf %36 : vector<8x128xf32>
    %38 = math.exp %37 : vector<8x128xf32>
    %cst_25 = arith.constant 1.000000e+00 : f32
    %39 = vector.broadcast %cst_25 : f32 to vector<8x128xf32>
    %40 = arith.addf %39, %38 : vector<8x128xf32>
    %41 = arith.divf %39, %40 : vector<8x128xf32>
    %c0_26 = arith.constant 0 : index
    %c0_27 = arith.constant 0 : index
    %42 = vector.load %arg11[%c0_26, %c0_27] : memref<8x128xf32, #tpu.memory_space<vmem>>, vector<8x128xf32>
    tpu.vector_store %arg11[%c0_26, %c0_27], %41 {strides = array<i32>} : memref<8x128xf32, #tpu.memory_space<vmem>>, vector<8x128xf32>,
    return
  }
  func.func @transform_0(%arg0: i32) -> (i32, i32) {
    %c0_i32 = arith.constant 0 : i32
    %c0_i32_0 = arith.constant 0 : i32
    return %arg0, %c0_i32 : i32, i32
  }
  func.func @transform_1(%arg0: i32) -> (i32, i32) {
    %c0_i32 = arith.constant 0 : i32
    %c0_i32_0 = arith.constant 0 : i32
    %c0_i32_1 = arith.constant 0 : i32
    return %c0_i32, %c0_i32_0 : i32, i32
  }
  func.func @transform_2(%arg0: i32) -> (i32, i32) {
    %c0_i32 = arith.constant 0 : i32
    %c0_i32_0 = arith.constant 0 : i32
    %c0_i32_1 = arith.constant 0 : i32
    return %c0_i32, %c0_i32_0 : i32, i32
  }
  func.func @transform_3(%arg0: i32) -> (i32, i32) {
    %c0_i32 = arith.constant 0 : i32
    %c0_i32_0 = arith.constant 0 : i32
    %c0_i32_1 = arith.constant 0 : i32
    return %c0_i32, %c0_i32_0 : i32, i32
  }
  func.func @transform_4(%arg0: i32) -> (i32, i32) {
    %c0_i32 = arith.constant 0 : i32
    %c0_i32_0 = arith.constant 0 : i32
    %c0_i32_1 = arith.constant 0 : i32
    return %c0_i32, %c0_i32_0 : i32, i32
  }
  func.func @transform_5(%arg0: i32) -> (i32, i32) {
    %c0_i32 = arith.constant 0 : i32
    %c0_i32_0 = arith.constant 0 : i32
    %c0_i32_1 = arith.constant 0 : i32
    return %c0_i32, %c0_i32_0 : i32, i32
  }
  func.func @transform_6(%arg0: i32) -> (i32, i32) {
    %c0_i32 = arith.constant 0 : i32
    %c0_i32_0 = arith.constant 0 : i32
    %c0_i32_1 = arith.constant 0 : i32
    return %c0_i32, %c0_i32_0 : i32, i32
  }
  func.func @transform_7(%arg0: i32) -> (i32, i32) {
    %c0_i32 = arith.constant 0 : i32
    %c0_i32_0 = arith.constant 0 : i32
    %c0_i32_1 = arith.constant 0 : i32
    return %c0_i32, %c0_i32_0 : i32, i32
  }
  func.func @transform_8(%arg0: i32) -> (i32, i32) {
    %c0_i32 = arith.constant 0 : i32
    %c0_i32_0 = arith.constant 0 : i32
    %c0_i32_1 = arith.constant 0 : i32
    return %c0_i32, %c0_i32_0 : i32, i32
  }
  func.func @transform_9(%arg0: i32) -> (i32, i32) {
    %c0_i32 = arith.constant 0 : i32
    %c0_i32_0 = arith.constant 0 : i32
    return %arg0, %c0_i32 : i32, i32
  }
  func.func @transform_10(%arg0: i32) -> (i32, i32) {
    %c0_i32 = arith.constant 0 : i32
    %c0_i32_0 = arith.constant 0 : i32
    return %arg0, %c0_i32 : i32, i32
  }
}

</mosaic_0001>

<llo_original>
// kernel: tpu_custom_call.1
$region0: #{tpu_custom_call.1}
  #allocation0 [shape = 'u32[]', space=smem, size = 0x4, offset = 0x4, fixed_abs, tag = 'smem constant byte address 0x4 - core index']
  #allocation1 [shape = 'u32[144,128]{1,0:T(1,128)}', space=vmem, size = 0x12000, scoped, tag = 'internal scratch']
  %s0 = inlined_call_operand.hbm [shape: f32[8,128], index: 0, kind: input, shape index: {}]
  %s1 = inlined_call_operand.hbm [shape: f32[128,128], index: 1, kind: input, shape index: {}]
  %s2 = inlined_call_operand.vmem [shape: f32[1,128], index: 2, kind: input, shape index: {}]
  %s3 = inlined_call_operand.hbm [shape: f32[128,128], index: 3, kind: input, shape index: {}]
  %s4 = inlined_call_operand.vmem [shape: f32[1,128], index: 4, kind: input, shape index: {}]
  %s5 = inlined_call_operand.hbm [shape: f32[128,128], index: 5, kind: input, shape index: {}]
  %s6 = inlined_call_operand.vmem [shape: f32[1,128], index: 6, kind: input, shape index: {}]
  %s7 = inlined_call_operand.hbm [shape: f32[128,128], index: 7, kind: input, shape index: {}]
  %s8 = inlined_call_operand.vmem [shape: f32[1,128], index: 8, kind: input, shape index: {}]
  %s9 = inlined_call_operand.hbm [shape: f32[8,128], index: 9, kind: output, shape index: {0}]
  %s10 = inlined_call_operand.hbm [shape: f32[8,128], index: 10, kind: output, shape index: {1}]
  %11 = xla_tuple %s9, %s10
  %s12 = sld [smem:[#allocation0]]
  $region74: #{tpu_custom_call.1} parent=0
    _
  %s14 = ssub.s32 1, %s12
  %s15 = scalar_select 0, %s14, %s12
  $region1: #{tpu_custom_call.1} parent=0
    #allocation2 [shape = 'u8[4096]{0}', space=vmem, size = 0x1000, scoped, tag = 'input window, operand 0, single buffered']
    #allocation3 [shape = 's32[1]{0}', space=sflag, size = 0x4, scoped, tag = 'scoped memory for tpu_custom_call.1']
    #allocation4 [shape = 's32[1]{0}', space=sflag, size = 0x4, scoped, tag = 'scoped memory for tpu_custom_call.1']
    #allocation5 [shape = 'u8[65536]{0}', space=vmem, size = 0x10000, scoped, tag = 'input window, operand 1, single buffered']
    #allocation6 [shape = 's32[1]{0}', space=sflag, size = 0x4, scoped, tag = 'scoped memory for tpu_custom_call.1']
    #allocation7 [shape = 'u8[65536]{0}', space=vmem, size = 0x10000, scoped, tag = 'input window, operand 3, single buffered']
    #allocation8 [shape = 'u8[65536]{0}', space=vmem, size = 0x10000, scoped, tag = 'input window, operand 5, single buffered']
    #allocation9 [shape = 's32[1]{0}', space=sflag, size = 0x4, scoped, tag = 'scoped memory for tpu_custom_call.1']
    #allocation10 [shape = 'u8[65536]{0}', space=vmem, size = 0x10000, scoped, tag = 'input window, operand 7, single buffered']
    #allocation11 [shape = 'u8[4096]{0}', space=vmem, size = 0x1000, scoped, tag = 'output window, operand 0, single buffered']
    #allocation12 [shape = 'u8[4096]{0}', space=vmem, size = 0x1000, scoped, tag = 'output window, operand 1, single buffered']
    #allocation13 [shape = 's32[1]{0}', space=sflag, size = 0x4, scoped, tag = 'scoped memory for tpu_custom_call.1']
    %16 = vsyncpa [#allocation3], 0
    %17 = vsyncpa [#allocation6], 0
    %18 = vsyncpa [#allocation9], 0
    %19 = vsyncpa [#allocation4], 0
    %20 = vsyncpa [#allocation13], 0
    // Predicated region
    $region2: #{tpu_custom_call.1} parent=1 // pred_check
      _
    $region3: #{tpu_custom_call.1} parent=1 // pred_check_branch
      %22 = sbr.rel (0) target = $region5
    $region4: #{tpu_custom_call.1} parent=1 // pred_region
      %s24 = ssub.s32 128, 128
      %25 = vsyncadd [#allocation3], %s24
      %s27 = sshll.u32 [#allocation2], 4
      %s28 = int_to_ptr.vmem [resolvable:$true] %s27
      %30 = dma.hbm_to_vmem [thread:$0]  %s0, 128, %s28, [#allocation3]
    $region5: #{tpu_custom_call.1} parent=1 // pred_fallthru
      _
    // Predicated region
    $region6: #{tpu_custom_call.1} parent=1 // pred_check
      _
    $region7: #{tpu_custom_call.1} parent=1 // pred_check_branch
      %32 = sbr.rel (0) target = $region9
    $region8: #{tpu_custom_call.1} parent=1 // pred_region
      %s34 = ssub.s32 2048, 2048
      %35 = vsyncadd [#allocation6], %s34
      %s36 = sshll.u32 [#allocation5], 4
      %s37 = int_to_ptr.vmem [resolvable:$true] %s36
      %42 = dma.hbm_to_vmem [thread:$0]  %s1, 2048, %s37, [#allocation6], 128, 128, 8
    $region9: #{tpu_custom_call.1} parent=1 // pred_fallthru
      _
    // Predicated region
    $region10: #{tpu_custom_call.1} parent=1 // pred_check
      _
    $region11: #{tpu_custom_call.1} parent=1 // pred_check_branch
      %44 = sbr.rel (0) target = $region13
    $region12: #{tpu_custom_call.1} parent=1 // pred_region
      _
    $region13: #{tpu_custom_call.1} parent=1 // pred_fallthru
      _
    // Predicated region
    $region14: #{tpu_custom_call.1} parent=1 // pred_check
      _
    $region15: #{tpu_custom_call.1} parent=1 // pred_check_branch
      %46 = sbr.rel (0) target = $region17
    $region16: #{tpu_custom_call.1} parent=1 // pred_region
      %s48 = ssub.s32 2048, 2048
      %49 = vsyncadd [#allocation6], %s48
      %s50 = sshll.u32 [#allocation7], 4
      %s51 = int_to_ptr.vmem [resolvable:$true] %s50
      %56 = dma.hbm_to_vmem [thread:$0]  %s3, 2048, %s51, [#allocation6], 128, 128, 8
    $region17: #{tpu_custom_call.1} parent=1 // pred_fallthru
      _
    // Predicated region
    $region18: #{tpu_custom_call.1} parent=1 // pred_check
      _
    $region19: #{tpu_custom_call.1} parent=1 // pred_check_branch
      %58 = sbr.rel (0) target = $region21
    $region20: #{tpu_custom_call.1} parent=1 // pred_region
      _
    $region21: #{tpu_custom_call.1} parent=1 // pred_fallthru
      _
    // Predicated region
    $region22: #{tpu_custom_call.1} parent=1 // pred_check
      _
    $region23: #{tpu_custom_call.1} parent=1 // pred_check_branch
      %60 = sbr.rel (0) target = $region25
    $region24: #{tpu_custom_call.1} parent=1 // pred_region
      %s62 = ssub.s32 2048, 2048
      %63 = vsyncadd [#allocation9], %s62
      %s64 = sshll.u32 [#allocation8], 4
      %s65 = int_to_ptr.vmem [resolvable:$true] %s64
      %70 = dma.hbm_to_vmem [thread:$0]  %s5, 2048, %s65, [#allocation9], 128, 128, 8
    $region25: #{tpu_custom_call.1} parent=1 // pred_fallthru
      _
    // Predicated region
    $region26: #{tpu_custom_call.1} parent=1 // pred_check
      _
    $region27: #{tpu_custom_call.1} parent=1 // pred_check_branch
      %72 = sbr.rel (0) target = $region29
    $region28: #{tpu_custom_call.1} parent=1 // pred_region
      _
    $region29: #{tpu_custom_call.1} parent=1 // pred_fallthru
      _
    // Predicated region
    $region30: #{tpu_custom_call.1} parent=1 // pred_check
      _
    $region31: #{tpu_custom_call.1} parent=1 // pred_check_branch
      %74 = sbr.rel (0) target = $region33
    $region32: #{tpu_custom_call.1} parent=1 // pred_region
      %s76 = ssub.s32 2048, 2048
      %77 = vsyncadd [#allocation9], %s76
      %s78 = sshll.u32 [#allocation10], 4
      %s79 = int_to_ptr.vmem [resolvable:$true] %s78
      %84 = dma.hbm_to_vmem [thread:$0]  %s7, 2048, %s79, [#allocation9], 128, 128, 8
    $region33: #{tpu_custom_call.1} parent=1 // pred_fallthru
      _
    // Predicated region
    $region34: #{tpu_custom_call.1} parent=1 // pred_check
      _
    $region35: #{tpu_custom_call.1} parent=1 // pred_check_branch
      %86 = sbr.rel (0) target = $region37
    $region36: #{tpu_custom_call.1} parent=1 // pred_region
      _
    $region37: #{tpu_custom_call.1} parent=1 // pred_fallthru
      _
    // Predicated region
    $region38: #{tpu_custom_call.1} parent=1 // pred_check
      _
    $region39: #{tpu_custom_call.1} parent=1 // pred_check_branch
      %88 = sbr.rel (0) target = $region41
    $region40: #{tpu_custom_call.1} parent=1 // pred_region
      %89 = dma.done [#allocation3], 128
    $region41: #{tpu_custom_call.1} parent=1 // pred_fallthru
      _
    // Predicated region
    $region42: #{tpu_custom_call.1} parent=1 // pred_check
      _
    $region43: #{tpu_custom_call.1} parent=1 // pred_check_branch
      %91 = sbr.rel (0) target = $region45
    $region44: #{tpu_custom_call.1} parent=1 // pred_region
      %92 = dma.done [#allocation6], 2048
    $region45: #{tpu_custom_call.1} parent=1 // pred_fallthru
      _
    // Predicated region
    $region46: #{tpu_custom_call.1} parent=1 // pred_check
      _
    $region47: #{tpu_custom_call.1} parent=1 // pred_check_branch
      %94 = sbr.rel (0) target = $region49
    $region48: #{tpu_custom_call.1} parent=1 // pred_region
      %95 = dma.done [#allocation6], 2048
    $region49: #{tpu_custom_call.1} parent=1 // pred_fallthru
      _
    // Predicated region
    $region50: #{tpu_custom_call.1} parent=1 // pred_check
      _
    $region51: #{tpu_custom_call.1} parent=1 // pred_check_branch
      %97 = sbr.rel (0) target = $region53
    $region52: #{tpu_custom_call.1} parent=1 // pred_region
      %98 = dma.done [#allocation9], 2048
    $region53: #{tpu_custom_call.1} parent=1 // pred_fallthru
      _
    // Predicated region
    $region54: #{tpu_custom_call.1} parent=1 // pred_check
      _
    $region55: #{tpu_custom_call.1} parent=1 // pred_check_branch
      %100 = sbr.rel (0) target = $region57
    $region56: #{tpu_custom_call.1} parent=1 // pred_region
      %101 = dma.done [#allocation9], 2048
    $region57: #{tpu_custom_call.1} parent=1 // pred_fallthru
      _
    %v102 = vld [vmem:[#allocation2] sm:$0xff]
    %v103 = vld [vmem:[#allocation5] sm:$0xff]
    %v104 = vld [vmem:[#allocation5 + $0x8] sm:$0xff]
    %v105 = vld [vmem:[#allocation5 + $0x10] sm:$0xff]
    %v106 = vld [vmem:[#allocation5 + $0x18] sm:$0xff]
    %v107 = vld [vmem:[#allocation5 + $0x20] sm:$0xff]
    %v108 = vld [vmem:[#allocation5 + $0x28] sm:$0xff]
    %v109 = vld [vmem:[#allocation5 + $0x30] sm:$0xff]
    %v110 = vld [vmem:[#allocation5 + $0x38] sm:$0xff]
    %v111 = vld [vmem:[#allocation5 + $0x40] sm:$0xff]
    %v112 = vld [vmem:[#allocation5 + $0x48] sm:$0xff]
    %v113 = vld [vmem:[#allocation5 + $0x50] sm:$0xff]
    %v114 = vld [vmem:[#allocation5 + $0x58] sm:$0xff]
    %v115 = vld [vmem:[#allocation5 + $0x60] sm:$0xff]
    %v116 = vld [vmem:[#allocation5 + $0x68] sm:$0xff]
    %v117 = vld [vmem:[#allocation5 + $0x70] sm:$0xff]
    %v118 = vld [vmem:[#allocation5 + $0x78] sm:$0xff]
    %v119 = vld [vmem:[%s2] sm:$0x1]
    %v121 = vlaneseq
    %v122 = vshrl.u32 %v121, 7
    %v123 = vsub.s32 0, %v122
    %v124 = vrot.slane %v119, %v123
    %126 = vmatprep.subr.mxu0 0.0
    %127 = vmatpush1.msra.mxu0 %v103
    %128 = vmatprep.subr.mxu0 0.0
    %129 = vmatpush1.msra.mxu0 %v104
    %130 = vmatprep.subr.mxu0 0.0
    %131 = vmatpush1.msra.mxu0 %v105
    %132 = vmatprep.subr.mxu0 0.0
    %133 = vmatpush1.msra.mxu0 %v106
    %134 = vmatprep.subr.mxu0 0.0
    %135 = vmatpush1.msra.mxu0 %v107
    %136 = vmatprep.subr.mxu0 0.0
    %137 = vmatpush1.msra.mxu0 %v108
    %138 = vmatprep.subr.mxu0 0.0
    %139 = vmatpush1.msra.mxu0 %v109
    %140 = vmatprep.subr.mxu0 0.0
    %141 = vmatpush1.msra.mxu0 %v110
    %142 = vmatprep.subr.mxu0 0.0
    %143 = vmatpush1.msra.mxu0 %v111
    %144 = vmatprep.subr.mxu0 0.0
    %145 = vmatpush1.msra.mxu0 %v112
    %146 = vmatprep.subr.mxu0 0.0
    %147 = vmatpush1.msra.mxu0 %v113
    %148 = vmatprep.subr.mxu0 0.0
    %149 = vmatpush1.msra.mxu0 %v114
    %150 = vmatprep.subr.mxu0 0.0
    %151 = vmatpush1.msra.mxu0 %v115
    %152 = vmatprep.subr.mxu0 0.0
    %153 = vmatpush1.msra.mxu0 %v116
    %154 = vmatprep.subr.mxu0 0.0
    %155 = vmatpush1.msra.mxu0 %v117
    %156 = vmatprep.subr.mxu0 0.0
    %157 = vmatpush1.msra.mxu0 %v118
    %158 = vmatprep.subr.mxu0 0.0
    %159 = vmatpush1.msra.mxu0 0.0
    %160 = vmatprep.subr.mxu0 0.0
    %161 = vmatpush1.msra.mxu0 0.0
    %162 = vmatprep.subr.mxu0 0.0
    %163 = vmatpush1.msra.mxu0 0.0
    %164 = vmatprep.subr.mxu0 0.0
    %165 = vmatpush1.msra.mxu0 0.0
    %166 = vmatprep.subr.mxu0 0.0
    %167 = vmatpush1.msra.mxu0 0.0
    %168 = vmatprep.subr.mxu0 0.0
    %169 = vmatpush1.msra.mxu0 0.0
    %170 = vmatprep.subr.mxu0 0.0
    %171 = vmatpush1.msra.mxu0 0.0
    %172 = vmatprep.subr.mxu0 0.0
    %173 = vmatpush1.msra.mxu0 0.0
    %174 = vmatprep.subr.mxu0 0.0
    %175 = vmatpush1.msra.mxu0 0.0
    %176 = vmatprep.subr.mxu0 0.0
    %177 = vmatpush1.msra.mxu0 0.0
    %178 = vmatprep.subr.mxu0 0.0
    %179 = vmatpush1.msra.mxu0 0.0
    %180 = vmatprep.subr.mxu0 0.0
    %181 = vmatpush1.msra.mxu0 0.0
    %182 = vmatprep.subr.mxu0 0.0
    %183 = vmatpush1.msra.mxu0 0.0
    %184 = vmatprep.subr.mxu0 0.0
    %185 = vmatpush1.msra.mxu0 0.0
    %186 = vmatprep.subr.mxu0 0.0
    %187 = vmatpush1.msra.mxu0 0.0
    %188 = vmatprep.subr.mxu0 0.0
    %189 = vmatpush1.msra.mxu0 0.0
    %190 = vmatprep.mubr.f32.mxu0 0.0
    %191 = vmatmul.mubr.f32.gmra.mrb[0].mxu0 %v102
    %v192 = vpop.f32.mrb[0].mxu0
    %v193 = vadd.f32 %v124, %v192
    %v194 = vpop.f32.mrb[0].mxu0
    %195 = vdwg.mxu0
    %v196 = vxor.u32 %v193, 2147483648
    %v197 = vmul.f32 %v196, 1.442695
    %v198 = vpow.pop %v197
    %v199 = vadd.f32 %v198, 1.0
    %v200 = vrcp.pop %v199
    %v201 = vmul.f32 1.0, %v200
    %v202 = vld [vmem:[#allocation7] sm:$0xff]
    %v203 = vld [vmem:[#allocation7 + $0x8] sm:$0xff]
    %v204 = vld [vmem:[#allocation7 + $0x10] sm:$0xff]
    %v205 = vld [vmem:[#allocation7 + $0x18] sm:$0xff]
    %v206 = vld [vmem:[#allocation7 + $0x20] sm:$0xff]
    %v207 = vld [vmem:[#allocation7 + $0x28] sm:$0xff]
    %v208 = vld [vmem:[#allocation7 + $0x30] sm:$0xff]
    %v209 = vld [vmem:[#allocation7 + $0x38] sm:$0xff]
    %v210 = vld [vmem:[#allocation7 + $0x40] sm:$0xff]
    %v211 = vld [vmem:[#allocation7 + $0x48] sm:$0xff]
    %v212 = vld [vmem:[#allocation7 + $0x50] sm:$0xff]
    %v213 = vld [vmem:[#allocation7 + $0x58] sm:$0xff]
    %v214 = vld [vmem:[#allocation7 + $0x60] sm:$0xff]
    %v215 = vld [vmem:[#allocation7 + $0x68] sm:$0xff]
    %v216 = vld [vmem:[#allocation7 + $0x70] sm:$0xff]
    %v217 = vld [vmem:[#allocation7 + $0x78] sm:$0xff]
    %v218 = vld [vmem:[%s4] sm:$0x1]
    %v220 = vlaneseq
    %v221 = vshrl.u32 %v220, 7
    %v222 = vsub.s32 0, %v221
    %v223 = vrot.slane %v218, %v222
    %225 = vmatprep.subr.mxu0 0.0
    %226 = vmatpush1.msra.mxu0 %v202
    %227 = vmatprep.subr.mxu0 0.0
    %228 = vmatpush1.msra.mxu0 %v203
    %229 = vmatprep.subr.mxu0 0.0
    %230 = vmatpush1.msra.mxu0 %v204
    %231 = vmatprep.subr.mxu0 0.0
    %232 = vmatpush1.msra.mxu0 %v205
    %233 = vmatprep.subr.mxu0 0.0
    %234 = vmatpush1.msra.mxu0 %v206
    %235 = vmatprep.subr.mxu0 0.0
    %236 = vmatpush1.msra.mxu0 %v207
    %237 = vmatprep.subr.mxu0 0.0
    %238 = vmatpush1.msra.mxu0 %v208
    %239 = vmatprep.subr.mxu0 0.0
    %240 = vmatpush1.msra.mxu0 %v209
    %241 = vmatprep.subr.mxu0 0.0
    %242 = vmatpush1.msra.mxu0 %v210
    %243 = vmatprep.subr.mxu0 0.0
    %244 = vmatpush1.msra.mxu0 %v211
    %245 = vmatprep.subr.mxu0 0.0
    %246 = vmatpush1.msra.mxu0 %v212
    %247 = vmatprep.subr.mxu0 0.0
    %248 = vmatpush1.msra.mxu0 %v213
    %249 = vmatprep.subr.mxu0 0.0
    %250 = vmatpush1.msra.mxu0 %v214
    %251 = vmatprep.subr.mxu0 0.0
    %252 = vmatpush1.msra.mxu0 %v215
    %253 = vmatprep.subr.mxu0 0.0
    %254 = vmatpush1.msra.mxu0 %v216
    %255 = vmatprep.subr.mxu0 0.0
    %256 = vmatpush1.msra.mxu0 %v217
    %257 = vmatprep.subr.mxu0 0.0
    %258 = vmatpush1.msra.mxu0 0.0
    %259 = vmatprep.subr.mxu0 0.0
    %260 = vmatpush1.msra.mxu0 0.0
    %261 = vmatprep.subr.mxu0 0.0
    %262 = vmatpush1.msra.mxu0 0.0
    %263 = vmatprep.subr.mxu0 0.0
    %264 = vmatpush1.msra.mxu0 0.0
    %265 = vmatprep.subr.mxu0 0.0
    %266 = vmatpush1.msra.mxu0 0.0
    %267 = vmatprep.subr.mxu0 0.0
    %268 = vmatpush1.msra.mxu0 0.0
    %269 = vmatprep.subr.mxu0 0.0
    %270 = vmatpush1.msra.mxu0 0.0
    %271 = vmatprep.subr.mxu0 0.0
    %272 = vmatpush1.msra.mxu0 0.0
    %273 = vmatprep.subr.mxu0 0.0
    %274 = vmatpush1.msra.mxu0 0.0
    %275 = vmatprep.subr.mxu0 0.0
    %276 = vmatpush1.msra.mxu0 0.0
    %277 = vmatprep.subr.mxu0 0.0
    %278 = vmatpush1.msra.mxu0 0.0
    %279 = vmatprep.subr.mxu0 0.0
    %280 = vmatpush1.msra.mxu0 0.0
    %281 = vmatprep.subr.mxu0 0.0
    %282 = vmatpush1.msra.mxu0 0.0
    %283 = vmatprep.subr.mxu0 0.0
    %284 = vmatpush1.msra.mxu0 0.0
    %285 = vmatprep.subr.mxu0 0.0
    %286 = vmatpush1.msra.mxu0 0.0
    %287 = vmatprep.subr.mxu0 0.0
    %288 = vmatpush1.msra.mxu0 0.0
    %289 = vmatprep.mubr.f32.mxu0 0.0
    %290 = vmatmul.mubr.f32.gmra.mrb[0].mxu0 %v201
    %v291 = vpop.f32.mrb[0].mxu0
    %v292 = vadd.f32 %v223, %v291
    %v293 = vpop.f32.mrb[0].mxu0
    %294 = vdwg.mxu0
    %v295 = vxor.u32 %v292, 2147483648
    %v296 = vmul.f32 %v295, 1.442695
    %v297 = vpow.pop %v296
    %v298 = vadd.f32 %v297, 1.0
    %v299 = vrcp.pop %v298
    %v300 = vmul.f32 1.0, %v299
    %301 = vst [vmem:[#allocation11] sm:$0xff] %v300
    %v302 = vld [vmem:[#allocation8] sm:$0xff]
    %v303 = vld [vmem:[#allocation8 + $0x8] sm:$0xff]
    %v304 = vld [vmem:[#allocation8 + $0x10] sm:$0xff]
    %v305 = vld [vmem:[#allocation8 + $0x18] sm:$0xff]
    %v306 = vld [vmem:[#allocation8 + $0x20] sm:$0xff]
    %v307 = vld [vmem:[#allocation8 + $0x28] sm:$0xff]
    %v308 = vld [vmem:[#allocation8 + $0x30] sm:$0xff]
    %v309 = vld [vmem:[#allocation8 + $0x38] sm:$0xff]
    %v310 = vld [vmem:[#allocation8 + $0x40] sm:$0xff]
    %v311 = vld [vmem:[#allocation8 + $0x48] sm:$0xff]
    %v312 = vld [vmem:[#allocation8 + $0x50] sm:$0xff]
    %v313 = vld [vmem:[#allocation8 + $0x58] sm:$0xff]
    %v314 = vld [vmem:[#allocation8 + $0x60] sm:$0xff]
    %v315 = vld [vmem:[#allocation8 + $0x68] sm:$0xff]
    %v316 = vld [vmem:[#allocation8 + $0x70] sm:$0xff]
    %v317 = vld [vmem:[#allocation8 + $0x78] sm:$0xff]
    %v318 = vld [vmem:[%s6] sm:$0x1]
    %v320 = vlaneseq
    %v321 = vshrl.u32 %v320, 7
    %v322 = vsub.s32 0, %v321
    %v323 = vrot.slane %v318, %v322
    %325 = vmatprep.subr.mxu0 0.0
    %326 = vmatpush1.msra.mxu0 %v302
    %327 = vmatprep.subr.mxu0 0.0
    %328 = vmatpush1.msra.mxu0 %v303
    %329 = vmatprep.subr.mxu0 0.0
    %330 = vmatpush1.msra.mxu0 %v304
    %331 = vmatprep.subr.mxu0 0.0
    %332 = vmatpush1.msra.mxu0 %v305
    %333 = vmatprep.subr.mxu0 0.0
    %334 = vmatpush1.msra.mxu0 %v306
    %335 = vmatprep.subr.mxu0 0.0
    %336 = vmatpush1.msra.mxu0 %v307
    %337 = vmatprep.subr.mxu0 0.0
    %338 = vmatpush1.msra.mxu0 %v308
    %339 = vmatprep.subr.mxu0 0.0
    %340 = vmatpush1.msra.mxu0 %v309
    %341 = vmatprep.subr.mxu0 0.0
    %342 = vmatpush1.msra.mxu0 %v310
    %343 = vmatprep.subr.mxu0 0.0
    %344 = vmatpush1.msra.mxu0 %v311
    %345 = vmatprep.subr.mxu0 0.0
    %346 = vmatpush1.msra.mxu0 %v312
    %347 = vmatprep.subr.mxu0 0.0
    %348 = vmatpush1.msra.mxu0 %v313
    %349 = vmatprep.subr.mxu0 0.0
    %350 = vmatpush1.msra.mxu0 %v314
    %351 = vmatprep.subr.mxu0 0.0
    %352 = vmatpush1.msra.mxu0 %v315
    %353 = vmatprep.subr.mxu0 0.0
    %354 = vmatpush1.msra.mxu0 %v316
    %355 = vmatprep.subr.mxu0 0.0
    %356 = vmatpush1.msra.mxu0 %v317
    %357 = vmatprep.subr.mxu0 0.0
    %358 = vmatpush1.msra.mxu0 0.0
    %359 = vmatprep.subr.mxu0 0.0
    %360 = vmatpush1.msra.mxu0 0.0
    %361 = vmatprep.subr.mxu0 0.0
    %362 = vmatpush1.msra.mxu0 0.0
    %363 = vmatprep.subr.mxu0 0.0
    %364 = vmatpush1.msra.mxu0 0.0
    %365 = vmatprep.subr.mxu0 0.0
    %366 = vmatpush1.msra.mxu0 0.0
    %367 = vmatprep.subr.mxu0 0.0
    %368 = vmatpush1.msra.mxu0 0.0
    %369 = vmatprep.subr.mxu0 0.0
    %370 = vmatpush1.msra.mxu0 0.0
    %371 = vmatprep.subr.mxu0 0.0
    %372 = vmatpush1.msra.mxu0 0.0
    %373 = vmatprep.subr.mxu0 0.0
    %374 = vmatpush1.msra.mxu0 0.0
    %375 = vmatprep.subr.mxu0 0.0
    %376 = vmatpush1.msra.mxu0 0.0
    %377 = vmatprep.subr.mxu0 0.0
    %378 = vmatpush1.msra.mxu0 0.0
    %379 = vmatprep.subr.mxu0 0.0
    %380 = vmatpush1.msra.mxu0 0.0
    %381 = vmatprep.subr.mxu0 0.0
    %382 = vmatpush1.msra.mxu0 0.0
    %383 = vmatprep.subr.mxu0 0.0
    %384 = vmatpush1.msra.mxu0 0.0
    %385 = vmatprep.subr.mxu0 0.0
    %386 = vmatpush1.msra.mxu0 0.0
    %387 = vmatprep.subr.mxu0 0.0
    %388 = vmatpush1.msra.mxu0 0.0
    %389 = vmatprep.mubr.f32.mxu0 0.0
    %390 = vmatmul.mubr.f32.gmra.mrb[0].mxu0 %v300
    %v391 = vpop.f32.mrb[0].mxu0
    %v392 = vadd.f32 %v323, %v391
    %v393 = vpop.f32.mrb[0].mxu0
    %394 = vdwg.mxu0
    %v395 = vxor.u32 %v392, 2147483648
    %v396 = vmul.f32 %v395, 1.442695
    %v397 = vpow.pop %v396
    %v398 = vadd.f32 %v397, 1.0
    %v399 = vrcp.pop %v398
    %v400 = vmul.f32 1.0, %v399
    %v401 = vld [vmem:[#allocation10] sm:$0xff]
    %v402 = vld [vmem:[#allocation10 + $0x8] sm:$0xff]
    %v403 = vld [vmem:[#allocation10 + $0x10] sm:$0xff]
    %v404 = vld [vmem:[#allocation10 + $0x18] sm:$0xff]
    %v405 = vld [vmem:[#allocation10 + $0x20] sm:$0xff]
    %v406 = vld [vmem:[#allocation10 + $0x28] sm:$0xff]
    %v407 = vld [vmem:[#allocation10 + $0x30] sm:$0xff]
    %v408 = vld [vmem:[#allocation10 + $0x38] sm:$0xff]
    %v409 = vld [vmem:[#allocation10 + $0x40] sm:$0xff]
    %v410 = vld [vmem:[#allocation10 + $0x48] sm:$0xff]
    %v411 = vld [vmem:[#allocation10 + $0x50] sm:$0xff]
    %v412 = vld [vmem:[#allocation10 + $0x58] sm:$0xff]
    %v413 = vld [vmem:[#allocation10 + $0x60] sm:$0xff]
    %v414 = vld [vmem:[#allocation10 + $0x68] sm:$0xff]
    %v415 = vld [vmem:[#allocation10 + $0x70] sm:$0xff]
    %v416 = vld [vmem:[#allocation10 + $0x78] sm:$0xff]
    %v417 = vld [vmem:[%s8] sm:$0x1]
    %v419 = vlaneseq
    %v420 = vshrl.u32 %v419, 7
    %v421 = vsub.s32 0, %v420
    %v422 = vrot.slane %v417, %v421
    %424 = vmatprep.subr.mxu0 0.0
    %425 = vmatpush1.msra.mxu0 %v401
    %426 = vmatprep.subr.mxu0 0.0
    %427 = vmatpush1.msra.mxu0 %v402
    %428 = vmatprep.subr.mxu0 0.0
    %429 = vmatpush1.msra.mxu0 %v403
    %430 = vmatprep.subr.mxu0 0.0
    %431 = vmatpush1.msra.mxu0 %v404
    %432 = vmatprep.subr.mxu0 0.0
    %433 = vmatpush1.msra.mxu0 %v405
    %434 = vmatprep.subr.mxu0 0.0
    %435 = vmatpush1.msra.mxu0 %v406
    %436 = vmatprep.subr.mxu0 0.0
    %437 = vmatpush1.msra.mxu0 %v407
    %438 = vmatprep.subr.mxu0 0.0
    %439 = vmatpush1.msra.mxu0 %v408
    %440 = vmatprep.subr.mxu0 0.0
    %441 = vmatpush1.msra.mxu0 %v409
    %442 = vmatprep.subr.mxu0 0.0
    %443 = vmatpush1.msra.mxu0 %v410
    %444 = vmatprep.subr.mxu0 0.0
    %445 = vmatpush1.msra.mxu0 %v411
    %446 = vmatprep.subr.mxu0 0.0
    %447 = vmatpush1.msra.mxu0 %v412
    %448 = vmatprep.subr.mxu0 0.0
    %449 = vmatpush1.msra.mxu0 %v413
    %450 = vmatprep.subr.mxu0 0.0
    %451 = vmatpush1.msra.mxu0 %v414
    %452 = vmatprep.subr.mxu0 0.0
    %453 = vmatpush1.msra.mxu0 %v415
    %454 = vmatprep.subr.mxu0 0.0
    %455 = vmatpush1.msra.mxu0 %v416
    %456 = vmatprep.subr.mxu0 0.0
    %457 = vmatpush1.msra.mxu0 0.0
    %458 = vmatprep.subr.mxu0 0.0
    %459 = vmatpush1.msra.mxu0 0.0
    %460 = vmatprep.subr.mxu0 0.0
    %461 = vmatpush1.msra.mxu0 0.0
    %462 = vmatprep.subr.mxu0 0.0
    %463 = vmatpush1.msra.mxu0 0.0
    %464 = vmatprep.subr.mxu0 0.0
    %465 = vmatpush1.msra.mxu0 0.0
    %466 = vmatprep.subr.mxu0 0.0
    %467 = vmatpush1.msra.mxu0 0.0
    %468 = vmatprep.subr.mxu0 0.0
    %469 = vmatpush1.msra.mxu0 0.0
    %470 = vmatprep.subr.mxu0 0.0
    %471 = vmatpush1.msra.mxu0 0.0
    %472 = vmatprep.subr.mxu0 0.0
    %473 = vmatpush1.msra.mxu0 0.0
    %474 = vmatprep.subr.mxu0 0.0
    %475 = vmatpush1.msra.mxu0 0.0
    %476 = vmatprep.subr.mxu0 0.0
    %477 = vmatpush1.msra.mxu0 0.0
    %478 = vmatprep.subr.mxu0 0.0
    %479 = vmatpush1.msra.mxu0 0.0
    %480 = vmatprep.subr.mxu0 0.0
    %481 = vmatpush1.msra.mxu0 0.0
    %482 = vmatprep.subr.mxu0 0.0
    %483 = vmatpush1.msra.mxu0 0.0
    %484 = vmatprep.subr.mxu0 0.0
    %485 = vmatpush1.msra.mxu0 0.0
    %486 = vmatprep.subr.mxu0 0.0
    %487 = vmatpush1.msra.mxu0 0.0
    %488 = vmatprep.mubr.f32.mxu0 0.0
    %489 = vmatmul.mubr.f32.gmra.mrb[0].mxu0 %v400
    %v490 = vpop.f32.mrb[0].mxu0
    %v491 = vadd.f32 %v422, %v490
    %v492 = vpop.f32.mrb[0].mxu0
    %493 = vdwg.mxu0
    %v494 = vxor.u32 %v491, 2147483648
    %v495 = vmul.f32 %v494, 1.442695
    %v496 = vpow.pop %v495
    %v497 = vadd.f32 %v496, 1.0
    %v498 = vrcp.pop %v497
    %v499 = vmul.f32 1.0, %v498
    %500 = vst [vmem:[#allocation12] sm:$0xff] %v499
    // Predicated region
    $region58: #{tpu_custom_call.1} parent=1 // pred_check
      _
    $region59: #{tpu_custom_call.1} parent=1 // pred_check_branch
      %502 = sbr.rel (0) target = $region61
    $region60: #{tpu_custom_call.1} parent=1 // pred_region
      %s504 = ssub.s32 128, 128
      %505 = vsyncadd [#allocation4], %s504
      %s507 = sshll.u32 [#allocation11], 4
      %s508 = int_to_ptr.vmem [resolvable:$true] %s507
      %510 = dma.vmem_to_hbm [thread:$0]  %s508, 128, %s9, [#allocation4]
    $region61: #{tpu_custom_call.1} parent=1 // pred_fallthru
      _
    // Predicated region
    $region62: #{tpu_custom_call.1} parent=1 // pred_check
      _
    $region63: #{tpu_custom_call.1} parent=1 // pred_check_branch
      %512 = sbr.rel (0) target = $region65
    $region64: #{tpu_custom_call.1} parent=1 // pred_region
      %s514 = ssub.s32 128, 128
      %515 = vsyncadd [#allocation13], %s514
      %s517 = sshll.u32 [#allocation12], 4
      %s518 = int_to_ptr.vmem [resolvable:$true] %s517
      %520 = dma.vmem_to_hbm [thread:$0]  %s518, 128, %s10, [#allocation13]
    $region65: #{tpu_custom_call.1} parent=1 // pred_fallthru
      _
    // Predicated region
    $region66: #{tpu_custom_call.1} parent=1 // pred_check
      _
    $region67: #{tpu_custom_call.1} parent=1 // pred_check_branch
      %522 = sbr.rel (0) target = $region69
    $region68: #{tpu_custom_call.1} parent=1 // pred_region
      %523 = dma.done [#allocation4], 128
    $region69: #{tpu_custom_call.1} parent=1 // pred_fallthru
      _
    // Predicated region
    $region70: #{tpu_custom_call.1} parent=1 // pred_check
      _
    $region71: #{tpu_custom_call.1} parent=1 // pred_check_branch
      %525 = sbr.rel (0) target = $region73
    $region72: #{tpu_custom_call.1} parent=1 // pred_region
      %526 = dma.done [#allocation13], 128
    $region73: #{tpu_custom_call.1} parent=1 // pred_fallthru
      _
    %527 = vsyncpa [#allocation3], 1
    %528 = vsyncpa [#allocation6], 1
    %529 = vsyncpa [#allocation9], 1
    %530 = vsyncpa [#allocation4], 1
    %531 = vsyncpa [#allocation13], 1

// kernel: tpu_custom_call.1
$region0: #{tpu_custom_call.1}
  #allocation0 [shape = 'u32[]', space=smem, size = 0x4, offset = 0x4, fixed_abs, tag = 'smem constant byte address 0x4 - core index']
  #allocation1 [shape = 'u32[144,128]{1,0:T(1,128)}', space=vmem, size = 0x12000, scoped, tag = 'internal scratch']
  %s0 = inlined_call_operand.hbm [shape: f32[8,128], index: 0, kind: input, shape index: {}]
  %s1 = inlined_call_operand.hbm [shape: f32[128,128], index: 1, kind: input, shape index: {}]
  %s2 = inlined_call_operand.vmem [shape: f32[1,128], index: 2, kind: input, shape index: {}]
  %s3 = inlined_call_operand.hbm [shape: f32[128,128], index: 3, kind: input, shape index: {}]
  %s4 = inlined_call_operand.vmem [shape: f32[1,128], index: 4, kind: input, shape index: {}]
  %s5 = inlined_call_operand.hbm [shape: f32[128,128], index: 5, kind: input, shape index: {}]
  %s6 = inlined_call_operand.vmem [shape: f32[1,128], index: 6, kind: input, shape index: {}]
  %s7 = inlined_call_operand.hbm [shape: f32[128,128], index: 7, kind: input, shape index: {}]
  %s8 = inlined_call_operand.vmem [shape: f32[1,128], index: 8, kind: input, shape index: {}]
  %s9 = inlined_call_operand.hbm [shape: f32[8,128], index: 9, kind: output, shape index: {0}]
  %s10 = inlined_call_operand.hbm [shape: f32[8,128], index: 10, kind: output, shape index: {1}]
  %11 = xla_tuple %s9, %s10
  %s12 = sld [smem:[#allocation0]]
  $region74: #{tpu_custom_call.1} parent=0
    _
  %s14 = ssub.s32 1, %s12
  %s15 = scalar_select 0, %s14, %s12
  $region1: #{tpu_custom_call.1} parent=0
    #allocation2 [shape = 'u8[4096]{0}', space=vmem, size = 0x1000, scoped, tag = 'input window, operand 0, single buffered']
    #allocation3 [shape = 's32[1]{0}', space=sflag, size = 0x4, scoped, tag = 'scoped memory for tpu_custom_call.1']
    #allocation4 [shape = 's32[1]{0}', space=sflag, size = 0x4, scoped, tag = 'scoped memory for tpu_custom_call.1']
    #allocation5 [shape = 'u8[65536]{0}', space=vmem, size = 0x10000, scoped, tag = 'input window, operand 1, single buffered']
    #allocation6 [shape = 's32[1]{0}', space=sflag, size = 0x4, scoped, tag = 'scoped memory for tpu_custom_call.1']
    #allocation7 [shape = 'u8[65536]{0}', space=vmem, size = 0x10000, scoped, tag = 'input window, operand 3, single buffered']
    #allocation8 [shape = 'u8[65536]{0}', space=vmem, size = 0x10000, scoped, tag = 'input window, operand 5, single buffered']
    #allocation9 [shape = 's32[1]{0}', space=sflag, size = 0x4, scoped, tag = 'scoped memory for tpu_custom_call.1']
    #allocation10 [shape = 'u8[65536]{0}', space=vmem, size = 0x10000, scoped, tag = 'input window, operand 7, single buffered']
    #allocation11 [shape = 'u8[4096]{0}', space=vmem, size = 0x1000, scoped, tag = 'output window, operand 0, single buffered']
    #allocation12 [shape = 'u8[4096]{0}', space=vmem, size = 0x1000, scoped, tag = 'output window, operand 1, single buffered']
    #allocation13 [shape = 's32[1]{0}', space=sflag, size = 0x4, scoped, tag = 'scoped memory for tpu_custom_call.1']
    %16 = vsyncpa [#allocation3], 0
    %17 = vsyncpa [#allocation6], 0
    %18 = vsyncpa [#allocation9], 0
    %19 = vsyncpa [#allocation4], 0
    %20 = vsyncpa [#allocation13], 0
    // Predicated region
    $region2: #{tpu_custom_call.1} parent=1 // pred_check
      _
    $region3: #{tpu_custom_call.1} parent=1 // pred_check_branch
      %22 = sbr.rel (0) target = $region5
    $region4: #{tpu_custom_call.1} parent=1 // pred_region
      %s24 = ssub.s32 128, 128
      %25 = vsyncadd [#allocation3], %s24
      %s27 = sshll.u32 [#allocation2], 4
      %s28 = int_to_ptr.vmem [resolvable:$true] %s27
      %30 = dma.hbm_to_vmem [thread:$0]  %s0, 128, %s28, [#allocation3]
    $region5: #{tpu_custom_call.1} parent=1 // pred_fallthru
      _
    // Predicated region
    $region6: #{tpu_custom_call.1} parent=1 // pred_check
      _
    $region7: #{tpu_custom_call.1} parent=1 // pred_check_branch
      %32 = sbr.rel (0) target = $region9
    $region8: #{tpu_custom_call.1} parent=1 // pred_region
      %s34 = ssub.s32 2048, 2048
      %35 = vsyncadd [#allocation6], %s34
      %s36 = sshll.u32 [#allocation5], 4
      %s37 = int_to_ptr.vmem [resolvable:$true] %s36
      %42 = dma.hbm_to_vmem [thread:$0]  %s1, 2048, %s37, [#allocation6], 128, 128, 8
    $region9: #{tpu_custom_call.1} parent=1 // pred_fallthru
      _
    // Predicated region
    $region10: #{tpu_custom_call.1} parent=1 // pred_check
      _
    $region11: #{tpu_custom_call.1} parent=1 // pred_check_branch
      %44 = sbr.rel (0) target = $region13
    $region12: #{tpu_custom_call.1} parent=1 // pred_region
      _
    $region13: #{tpu_custom_call.1} parent=1 // pred_fallthru
      _
    // Predicated region
    $region14: #{tpu_custom_call.1} parent=1 // pred_check
      _
    $region15: #{tpu_custom_call.1} parent=1 // pred_check_branch
      %46 = sbr.rel (0) target = $region17
    $region16: #{tpu_custom_call.1} parent=1 // pred_region
      %s48 = ssub.s32 2048, 2048
      %49 = vsyncadd [#allocation6], %s48
      %s50 = sshll.u32 [#allocation7], 4
      %s51 = int_to_ptr.vmem [resolvable:$true] %s50
      %56 = dma.hbm_to_vmem [thread:$0]  %s3, 2048, %s51, [#allocation6], 128, 128, 8
    $region17: #{tpu_custom_call.1} parent=1 // pred_fallthru
      _
    // Predicated region
    $region18: #{tpu_custom_call.1} parent=1 // pred_check
      _
    $region19: #{tpu_custom_call.1} parent=1 // pred_check_branch
      %58 = sbr.rel (0) target = $region21
    $region20: #{tpu_custom_call.1} parent=1 // pred_region
      _
    $region21: #{tpu_custom_call.1} parent=1 // pred_fallthru
      _
    // Predicated region
    $region22: #{tpu_custom_call.1} parent=1 // pred_check
      _
    $region23: #{tpu_custom_call.1} parent=1 // pred_check_branch
      %60 = sbr.rel (0) target = $region25
    $region24: #{tpu_custom_call.1} parent=1 // pred_region
      %s62 = ssub.s32 2048, 2048
      %63 = vsyncadd [#allocation9], %s62
      %s64 = sshll.u32 [#allocation8], 4
      %s65 = int_to_ptr.vmem [resolvable:$true] %s64
      %70 = dma.hbm_to_vmem [thread:$0]  %s5, 2048, %s65, [#allocation9], 128, 128, 8
    $region25: #{tpu_custom_call.1} parent=1 // pred_fallthru
      _
    // Predicated region
    $region26: #{tpu_custom_call.1} parent=1 // pred_check
      _
    $region27: #{tpu_custom_call.1} parent=1 // pred_check_branch
      %72 = sbr.rel (0) target = $region29
    $region28: #{tpu_custom_call.1} parent=1 // pred_region
      _
    $region29: #{tpu_custom_call.1} parent=1 // pred_fallthru
      _
    // Predicated region
    $region30: #{tpu_custom_call.1} parent=1 // pred_check
      _
    $region31: #{tpu_custom_call.1} parent=1 // pred_check_branch
      %74 = sbr.rel (0) target = $region33
    $region32: #{tpu_custom_call.1} parent=1 // pred_region
      %s76 = ssub.s32 2048, 2048
      %77 = vsyncadd [#allocation9], %s76
      %s78 = sshll.u32 [#allocation10], 4
      %s79 = int_to_ptr.vmem [resolvable:$true] %s78
      %84 = dma.hbm_to_vmem [thread:$0]  %s7, 2048, %s79, [#allocation9], 128, 128, 8
    $region33: #{tpu_custom_call.1} parent=1 // pred_fallthru
      _
    // Predicated region
    $region34: #{tpu_custom_call.1} parent=1 // pred_check
      _
    $region35: #{tpu_custom_call.1} parent=1 // pred_check_branch
      %86 = sbr.rel (0) target = $region37
    $region36: #{tpu_custom_call.1} parent=1 // pred_region
      _
    $region37: #{tpu_custom_call.1} parent=1 // pred_fallthru
      _
    // Predicated region
    $region38: #{tpu_custom_call.1} parent=1 // pred_check
      _
    $region39: #{tpu_custom_call.1} parent=1 // pred_check_branch
      %88 = sbr.rel (0) target = $region41
    $region40: #{tpu_custom_call.1} parent=1 // pred_region
      %89 = dma.done [#allocation3], 128
    $region41: #{tpu_custom_call.1} parent=1 // pred_fallthru
      _
    // Predicated region
    $region42: #{tpu_custom_call.1} parent=1 // pred_check
      _
    $region43: #{tpu_custom_call.1} parent=1 // pred_check_branch
      %91 = sbr.rel (0) target = $region45
    $region44: #{tpu_custom_call.1} parent=1 // pred_region
      %92 = dma.done [#allocation6], 2048
    $region45: #{tpu_custom_call.1} parent=1 // pred_fallthru
      _
    // Predicated region
    $region46: #{tpu_custom_call.1} parent=1 // pred_check
      _
    $region47: #{tpu_custom_call.1} parent=1 // pred_check_branch
      %94 = sbr.rel (0) target = $region49
    $region48: #{tpu_custom_call.1} parent=1 // pred_region
      %95 = dma.done [#allocation6], 2048
    $region49: #{tpu_custom_call.1} parent=1 // pred_fallthru
      _
    // Predicated region
    $region50: #{tpu_custom_call.1} parent=1 // pred_check
      _
    $region51: #{tpu_custom_call.1} parent=1 // pred_check_branch
      %97 = sbr.rel (0) target = $region53
    $region52: #{tpu_custom_call.1} parent=1 // pred_region
      %98 = dma.done [#allocation9], 2048
    $region53: #{tpu_custom_call.1} parent=1 // pred_fallthru
      _
    // Predicated region
    $region54: #{tpu_custom_call.1} parent=1 // pred_check
      _
    $region55: #{tpu_custom_call.1} parent=1 // pred_check_branch
      %100 = sbr.rel (0) target = $region57
    $region56: #{tpu_custom_call.1} parent=1 // pred_region
      %101 = dma.done [#allocation9], 2048
    $region57: #{tpu_custom_call.1} parent=1 // pred_fallthru
      _
    %v102 = vld [vmem:[#allocation2] sm:$0xff]
    %v103 = vld [vmem:[#allocation5] sm:$0xff]
    %v104 = vld [vmem:[#allocation5 + $0x8] sm:$0xff]
    %v105 = vld [vmem:[#allocation5 + $0x10] sm:$0xff]
    %v106 = vld [vmem:[#allocation5 + $0x18] sm:$0xff]
    %v107 = vld [vmem:[#allocation5 + $0x20] sm:$0xff]
    %v108 = vld [vmem:[#allocation5 + $0x28] sm:$0xff]
    %v109 = vld [vmem:[#allocation5 + $0x30] sm:$0xff]
    %v110 = vld [vmem:[#allocation5 + $0x38] sm:$0xff]
    %v111 = vld [vmem:[#allocation5 + $0x40] sm:$0xff]
    %v112 = vld [vmem:[#allocation5 + $0x48] sm:$0xff]
    %v113 = vld [vmem:[#allocation5 + $0x50] sm:$0xff]
    %v114 = vld [vmem:[#allocation5 + $0x58] sm:$0xff]
    %v115 = vld [vmem:[#allocation5 + $0x60] sm:$0xff]
    %v116 = vld [vmem:[#allocation5 + $0x68] sm:$0xff]
    %v117 = vld [vmem:[#allocation5 + $0x70] sm:$0xff]
    %v118 = vld [vmem:[#allocation5 + $0x78] sm:$0xff]
    %v119 = vld [vmem:[%s2] sm:$0x1]
    %v121 = vlaneseq
    %v122 = vshrl.u32 %v121, 7
    %v123 = vsub.s32 0, %v122
    %v124 = vrot.slane %v119, %v123
    %126 = vmatprep.subr.mxu0 0.0
    %127 = vmatpush1.msra.mxu0 %v103
    %128 = vmatprep.subr.mxu0 0.0
    %129 = vmatpush1.msra.mxu0 %v104
    %130 = vmatprep.subr.mxu0 0.0
    %131 = vmatpush1.msra.mxu0 %v105
    %132 = vmatprep.subr.mxu0 0.0
    %133 = vmatpush1.msra.mxu0 %v106
    %134 = vmatprep.subr.mxu0 0.0
    %135 = vmatpush1.msra.mxu0 %v107
    %136 = vmatprep.subr.mxu0 0.0
    %137 = vmatpush1.msra.mxu0 %v108
    %138 = vmatprep.subr.mxu0 0.0
    %139 = vmatpush1.msra.mxu0 %v109
    %140 = vmatprep.subr.mxu0 0.0
    %141 = vmatpush1.msra.mxu0 %v110
    %142 = vmatprep.subr.mxu0 0.0
    %143 = vmatpush1.msra.mxu0 %v111
    %144 = vmatprep.subr.mxu0 0.0
    %145 = vmatpush1.msra.mxu0 %v112
    %146 = vmatprep.subr.mxu0 0.0
    %147 = vmatpush1.msra.mxu0 %v113
    %148 = vmatprep.subr.mxu0 0.0
    %149 = vmatpush1.msra.mxu0 %v114
    %150 = vmatprep.subr.mxu0 0.0
    %151 = vmatpush1.msra.mxu0 %v115
    %152 = vmatprep.subr.mxu0 0.0
    %153 = vmatpush1.msra.mxu0 %v116
    %154 = vmatprep.subr.mxu0 0.0
    %155 = vmatpush1.msra.mxu0 %v117
    %156 = vmatprep.subr.mxu0 0.0
    %157 = vmatpush1.msra.mxu0 %v118
    %158 = vmatprep.subr.mxu0 0.0
    %159 = vmatpush1.msra.mxu0 0.0
    %160 = vmatprep.subr.mxu0 0.0
    %161 = vmatpush1.msra.mxu0 0.0
    %162 = vmatprep.subr.mxu0 0.0
    %163 = vmatpush1.msra.mxu0 0.0
    %164 = vmatprep.subr.mxu0 0.0
    %165 = vmatpush1.msra.mxu0 0.0
    %166 = vmatprep.subr.mxu0 0.0
    %167 = vmatpush1.msra.mxu0 0.0
    %168 = vmatprep.subr.mxu0 0.0
    %169 = vmatpush1.msra.mxu0 0.0
    %170 = vmatprep.subr.mxu0 0.0
    %171 = vmatpush1.msra.mxu0 0.0
    %172 = vmatprep.subr.mxu0 0.0
    %173 = vmatpush1.msra.mxu0 0.0
    %174 = vmatprep.subr.mxu0 0.0
    %175 = vmatpush1.msra.mxu0 0.0
    %176 = vmatprep.subr.mxu0 0.0
    %177 = vmatpush1.msra.mxu0 0.0
    %178 = vmatprep.subr.mxu0 0.0
    %179 = vmatpush1.msra.mxu0 0.0
    %180 = vmatprep.subr.mxu0 0.0
    %181 = vmatpush1.msra.mxu0 0.0
    %182 = vmatprep.subr.mxu0 0.0
    %183 = vmatpush1.msra.mxu0 0.0
    %184 = vmatprep.subr.mxu0 0.0
    %185 = vmatpush1.msra.mxu0 0.0
    %186 = vmatprep.subr.mxu0 0.0
    %187 = vmatpush1.msra.mxu0 0.0
    %188 = vmatprep.subr.mxu0 0.0
    %189 = vmatpush1.msra.mxu0 0.0
    %190 = vmatprep.mubr.f32.mxu0 0.0
    %191 = vmatmul.mubr.f32.gmra.mrb[0].mxu0 %v102
    %v192 = vpop.f32.mrb[0].mxu0
    %v193 = vadd.f32 %v124, %v192
    %v194 = vpop.f32.mrb[0].mxu0
    %195 = vdwg.mxu0
    %v196 = vxor.u32 %v193, 2147483648
    %v197 = vmul.f32 %v196, 1.442695
    %v198 = vpow.pop %v197
    %v199 = vadd.f32 %v198, 1.0
    %v200 = vrcp.pop %v199
    %v201 = vmul.f32 1.0, %v200
    %v202 = vld [vmem:[#allocation7] sm:$0xff]
    %v203 = vld [vmem:[#allocation7 + $0x8] sm:$0xff]
    %v204 = vld [vmem:[#allocation7 + $0x10] sm:$0xff]
    %v205 = vld [vmem:[#allocation7 + $0x18] sm:$0xff]
    %v206 = vld [vmem:[#allocation7 + $0x20] sm:$0xff]
    %v207 = vld [vmem:[#allocation7 + $0x28] sm:$0xff]
    %v208 = vld [vmem:[#allocation7 + $0x30] sm:$0xff]
    %v209 = vld [vmem:[#allocation7 + $0x38] sm:$0xff]
    %v210 = vld [vmem:[#allocation7 + $0x40] sm:$0xff]
    %v211 = vld [vmem:[#allocation7 + $0x48] sm:$0xff]
    %v212 = vld [vmem:[#allocation7 + $0x50] sm:$0xff]
    %v213 = vld [vmem:[#allocation7 + $0x58] sm:$0xff]
    %v214 = vld [vmem:[#allocation7 + $0x60] sm:$0xff]
    %v215 = vld [vmem:[#allocation7 + $0x68] sm:$0xff]
    %v216 = vld [vmem:[#allocation7 + $0x70] sm:$0xff]
    %v217 = vld [vmem:[#allocation7 + $0x78] sm:$0xff]
    %v218 = vld [vmem:[%s4] sm:$0x1]
    %v220 = vlaneseq
    %v221 = vshrl.u32 %v220, 7
    %v222 = vsub.s32 0, %v221
    %v223 = vrot.slane %v218, %v222
    %225 = vmatprep.subr.mxu0 0.0
    %226 = vmatpush1.msra.mxu0 %v202
    %227 = vmatprep.subr.mxu0 0.0
    %228 = vmatpush1.msra.mxu0 %v203
    %229 = vmatprep.subr.mxu0 0.0
    %230 = vmatpush1.msra.mxu0 %v204
    %231 = vmatprep.subr.mxu0 0.0
    %232 = vmatpush1.msra.mxu0 %v205
    %233 = vmatprep.subr.mxu0 0.0
    %234 = vmatpush1.msra.mxu0 %v206
    %235 = vmatprep.subr.mxu0 0.0
    %236 = vmatpush1.msra.mxu0 %v207
    %237 = vmatprep.subr.mxu0 0.0
    %238 = vmatpush1.msra.mxu0 %v208
    %239 = vmatprep.subr.mxu0 0.0
    %240 = vmatpush1.msra.mxu0 %v209
    %241 = vmatprep.subr.mxu0 0.0
    %242 = vmatpush1.msra.mxu0 %v210
    %243 = vmatprep.subr.mxu0 0.0
    %244 = vmatpush1.msra.mxu0 %v211
    %245 = vmatprep.subr.mxu0 0.0
    %246 = vmatpush1.msra.mxu0 %v212
    %247 = vmatprep.subr.mxu0 0.0
    %248 = vmatpush1.msra.mxu0 %v213
    %249 = vmatprep.subr.mxu0 0.0
    %250 = vmatpush1.msra.mxu0 %v214
    %251 = vmatprep.subr.mxu0 0.0
    %252 = vmatpush1.msra.mxu0 %v215
    %253 = vmatprep.subr.mxu0 0.0
    %254 = vmatpush1.msra.mxu0 %v216
    %255 = vmatprep.subr.mxu0 0.0
    %256 = vmatpush1.msra.mxu0 %v217
    %257 = vmatprep.subr.mxu0 0.0
    %258 = vmatpush1.msra.mxu0 0.0
    %259 = vmatprep.subr.mxu0 0.0
    %260 = vmatpush1.msra.mxu0 0.0
    %261 = vmatprep.subr.mxu0 0.0
    %262 = vmatpush1.msra.mxu0 0.0
    %263 = vmatprep.subr.mxu0 0.0
    %264 = vmatpush1.msra.mxu0 0.0
    %265 = vmatprep.subr.mxu0 0.0
    %266 = vmatpush1.msra.mxu0 0.0
    %267 = vmatprep.subr.mxu0 0.0
    %268 = vmatpush1.msra.mxu0 0.0
    %269 = vmatprep.subr.mxu0 0.0
    %270 = vmatpush1.msra.mxu0 0.0
    %271 = vmatprep.subr.mxu0 0.0
    %272 = vmatpush1.msra.mxu0 0.0
    %273 = vmatprep.subr.mxu0 0.0
    %274 = vmatpush1.msra.mxu0 0.0
    %275 = vmatprep.subr.mxu0 0.0
    %276 = vmatpush1.msra.mxu0 0.0
    %277 = vmatprep.subr.mxu0 0.0
    %278 = vmatpush1.msra.mxu0 0.0
    %279 = vmatprep.subr.mxu0 0.0
    %280 = vmatpush1.msra.mxu0 0.0
    %281 = vmatprep.subr.mxu0 0.0
    %282 = vmatpush1.msra.mxu0 0.0
    %283 = vmatprep.subr.mxu0 0.0
    %284 = vmatpush1.msra.mxu0 0.0
    %285 = vmatprep.subr.mxu0 0.0
    %286 = vmatpush1.msra.mxu0 0.0
    %287 = vmatprep.subr.mxu0 0.0
    %288 = vmatpush1.msra.mxu0 0.0
    %289 = vmatprep.mubr.f32.mxu0 0.0
    %290 = vmatmul.mubr.f32.gmra.mrb[0].mxu0 %v201
    %v291 = vpop.f32.mrb[0].mxu0
    %v292 = vadd.f32 %v223, %v291
    %v293 = vpop.f32.mrb[0].mxu0
    %294 = vdwg.mxu0
    %v295 = vxor.u32 %v292, 2147483648
    %v296 = vmul.f32 %v295, 1.442695
    %v297 = vpow.pop %v296
    %v298 = vadd.f32 %v297, 1.0
    %v299 = vrcp.pop %v298
    %v300 = vmul.f32 1.0, %v299
    %301 = vst [vmem:[#allocation11] sm:$0xff] %v300
    %v302 = vld [vmem:[#allocation8] sm:$0xff]
    %v303 = vld [vmem:[#allocation8 + $0x8] sm:$0xff]
    %v304 = vld [vmem:[#allocation8 + $0x10] sm:$0xff]
    %v305 = vld [vmem:[#allocation8 + $0x18] sm:$0xff]
    %v306 = vld [vmem:[#allocation8 + $0x20] sm:$0xff]
    %v307 = vld [vmem:[#allocation8 + $0x28] sm:$0xff]
    %v308 = vld [vmem:[#allocation8 + $0x30] sm:$0xff]
    %v309 = vld [vmem:[#allocation8 + $0x38] sm:$0xff]
    %v310 = vld [vmem:[#allocation8 + $0x40] sm:$0xff]
    %v311 = vld [vmem:[#allocation8 + $0x48] sm:$0xff]
    %v312 = vld [vmem:[#allocation8 + $0x50] sm:$0xff]
    %v313 = vld [vmem:[#allocation8 + $0x58] sm:$0xff]
    %v314 = vld [vmem:[#allocation8 + $0x60] sm:$0xff]
    %v315 = vld [vmem:[#allocation8 + $0x68] sm:$0xff]
    %v316 = vld [vmem:[#allocation8 + $0x70] sm:$0xff]
    %v317 = vld [vmem:[#allocation8 + $0x78] sm:$0xff]
    %v318 = vld [vmem:[%s6] sm:$0x1]
    %v320 = vlaneseq
    %v321 = vshrl.u32 %v320, 7
    %v322 = vsub.s32 0, %v321
    %v323 = vrot.slane %v318, %v322
    %325 = vmatprep.subr.mxu0 0.0
    %326 = vmatpush1.msra.mxu0 %v302
    %327 = vmatprep.subr.mxu0 0.0
    %328 = vmatpush1.msra.mxu0 %v303
    %329 = vmatprep.subr.mxu0 0.0
    %330 = vmatpush1.msra.mxu0 %v304
    %331 = vmatprep.subr.mxu0 0.0
    %332 = vmatpush1.msra.mxu0 %v305
    %333 = vmatprep.subr.mxu0 0.0
    %334 = vmatpush1.msra.mxu0 %v306
    %335 = vmatprep.subr.mxu0 0.0
    %336 = vmatpush1.msra.mxu0 %v307
    %337 = vmatprep.subr.mxu0 0.0
    %338 = vmatpush1.msra.mxu0 %v308
    %339 = vmatprep.subr.mxu0 0.0
    %340 = vmatpush1.msra.mxu0 %v309
    %341 = vmatprep.subr.mxu0 0.0
    %342 = vmatpush1.msra.mxu0 %v310
    %343 = vmatprep.subr.mxu0 0.0
    %344 = vmatpush1.msra.mxu0 %v311
    %345 = vmatprep.subr.mxu0 0.0
    %346 = vmatpush1.msra.mxu0 %v312
    %347 = vmatprep.subr.mxu0 0.0
    %348 = vmatpush1.msra.mxu0 %v313
    %349 = vmatprep.subr.mxu0 0.0
    %350 = vmatpush1.msra.mxu0 %v314
    %351 = vmatprep.subr.mxu0 0.0
    %352 = vmatpush1.msra.mxu0 %v315
    %353 = vmatprep.subr.mxu0 0.0
    %354 = vmatpush1.msra.mxu0 %v316
    %355 = vmatprep.subr.mxu0 0.0
    %356 = vmatpush1.msra.mxu0 %v317
    %357 = vmatprep.subr.mxu0 0.0
    %358 = vmatpush1.msra.mxu0 0.0
    %359 = vmatprep.subr.mxu0 0.0
    %360 = vmatpush1.msra.mxu0 0.0
    %361 = vmatprep.subr.mxu0 0.0
    %362 = vmatpush1.msra.mxu0 0.0
    %363 = vmatprep.subr.mxu0 0.0
    %364 = vmatpush1.msra.mxu0 0.0
    %365 = vmatprep.subr.mxu0 0.0
    %366 = vmatpush1.msra.mxu0 0.0
    %367 = vmatprep.subr.mxu0 0.0
    %368 = vmatpush1.msra.mxu0 0.0
    %369 = vmatprep.subr.mxu0 0.0
    %370 = vmatpush1.msra.mxu0 0.0
    %371 = vmatprep.subr.mxu0 0.0
    %372 = vmatpush1.msra.mxu0 0.0
    %373 = vmatprep.subr.mxu0 0.0
    %374 = vmatpush1.msra.mxu0 0.0
    %375 = vmatprep.subr.mxu0 0.0
    %376 = vmatpush1.msra.mxu0 0.0
    %377 = vmatprep.subr.mxu0 0.0
    %378 = vmatpush1.msra.mxu0 0.0
    %379 = vmatprep.subr.mxu0 0.0
    %380 = vmatpush1.msra.mxu0 0.0
    %381 = vmatprep.subr.mxu0 0.0
    %382 = vmatpush1.msra.mxu0 0.0
    %383 = vmatprep.subr.mxu0 0.0
    %384 = vmatpush1.msra.mxu0 0.0
    %385 = vmatprep.subr.mxu0 0.0
    %386 = vmatpush1.msra.mxu0 0.0
    %387 = vmatprep.subr.mxu0 0.0
    %388 = vmatpush1.msra.mxu0 0.0
    %389 = vmatprep.mubr.f32.mxu0 0.0
    %390 = vmatmul.mubr.f32.gmra.mrb[0].mxu0 %v300
    %v391 = vpop.f32.mrb[0].mxu0
    %v392 = vadd.f32 %v323, %v391
    %v393 = vpop.f32.mrb[0].mxu0
    %394 = vdwg.mxu0
    %v395 = vxor.u32 %v392, 2147483648
    %v396 = vmul.f32 %v395, 1.442695
    %v397 = vpow.pop %v396
    %v398 = vadd.f32 %v397, 1.0
    %v399 = vrcp.pop %v398
    %v400 = vmul.f32 1.0, %v399
    %v401 = vld [vmem:[#allocation10] sm:$0xff]
    %v402 = vld [vmem:[#allocation10 + $0x8] sm:$0xff]
    %v403 = vld [vmem:[#allocation10 + $0x10] sm:$0xff]
    %v404 = vld [vmem:[#allocation10 + $0x18] sm:$0xff]
    %v405 = vld [vmem:[#allocation10 + $0x20] sm:$0xff]
    %v406 = vld [vmem:[#allocation10 + $0x28] sm:$0xff]
    %v407 = vld [vmem:[#allocation10 + $0x30] sm:$0xff]
    %v408 = vld [vmem:[#allocation10 + $0x38] sm:$0xff]
    %v409 = vld [vmem:[#allocation10 + $0x40] sm:$0xff]
    %v410 = vld [vmem:[#allocation10 + $0x48] sm:$0xff]
    %v411 = vld [vmem:[#allocation10 + $0x50] sm:$0xff]
    %v412 = vld [vmem:[#allocation10 + $0x58] sm:$0xff]
    %v413 = vld [vmem:[#allocation10 + $0x60] sm:$0xff]
    %v414 = vld [vmem:[#allocation10 + $0x68] sm:$0xff]
    %v415 = vld [vmem:[#allocation10 + $0x70] sm:$0xff]
    %v416 = vld [vmem:[#allocation10 + $0x78] sm:$0xff]
    %v417 = vld [vmem:[%s8] sm:$0x1]
    %v419 = vlaneseq
    %v420 = vshrl.u32 %v419, 7
    %v421 = vsub.s32 0, %v420
    %v422 = vrot.slane %v417, %v421
    %424 = vmatprep.subr.mxu0 0.0
    %425 = vmatpush1.msra.mxu0 %v401
    %426 = vmatprep.subr.mxu0 0.0
    %427 = vmatpush1.msra.mxu0 %v402
    %428 = vmatprep.subr.mxu0 0.0
    %429 = vmatpush1.msra.mxu0 %v403
    %430 = vmatprep.subr.mxu0 0.0
    %431 = vmatpush1.msra.mxu0 %v404
    %432 = vmatprep.subr.mxu0 0.0
    %433 = vmatpush1.msra.mxu0 %v405
    %434 = vmatprep.subr.mxu0 0.0
    %435 = vmatpush1.msra.mxu0 %v406
    %436 = vmatprep.subr.mxu0 0.0
    %437 = vmatpush1.msra.mxu0 %v407
    %438 = vmatprep.subr.mxu0 0.0
    %439 = vmatpush1.msra.mxu0 %v408
    %440 = vmatprep.subr.mxu0 0.0
    %441 = vmatpush1.msra.mxu0 %v409
    %442 = vmatprep.subr.mxu0 0.0
    %443 = vmatpush1.msra.mxu0 %v410
    %444 = vmatprep.subr.mxu0 0.0
    %445 = vmatpush1.msra.mxu0 %v411
    %446 = vmatprep.subr.mxu0 0.0
    %447 = vmatpush1.msra.mxu0 %v412
    %448 = vmatprep.subr.mxu0 0.0
    %449 = vmatpush1.msra.mxu0 %v413
    %450 = vmatprep.subr.mxu0 0.0
    %451 = vmatpush1.msra.mxu0 %v414
    %452 = vmatprep.subr.mxu0 0.0
    %453 = vmatpush1.msra.mxu0 %v415
    %454 = vmatprep.subr.mxu0 0.0
    %455 = vmatpush1.msra.mxu0 %v416
    %456 = vmatprep.subr.mxu0 0.0
    %457 = vmatpush1.msra.mxu0 0.0
    %458 = vmatprep.subr.mxu0 0.0
    %459 = vmatpush1.msra.mxu0 0.0
    %460 = vmatprep.subr.mxu0 0.0
    %461 = vmatpush1.msra.mxu0 0.0
    %462 = vmatprep.subr.mxu0 0.0
    %463 = vmatpush1.msra.mxu0 0.0
    %464 = vmatprep.subr.mxu0 0.0
    %465 = vmatpush1.msra.mxu0 0.0
    %466 = vmatprep.subr.mxu0 0.0
    %467 = vmatpush1.msra.mxu0 0.0
    %468 = vmatprep.subr.mxu0 0.0
    %469 = vmatpush1.msra.mxu0 0.0
    %470 = vmatprep.subr.mxu0 0.0
    %471 = vmatpush1.msra.mxu0 0.0
    %472 = vmatprep.subr.mxu0 0.0
    %473 = vmatpush1.msra.mxu0 0.0
    %474 = vmatprep.subr.mxu0 0.0
    %475 = vmatpush1.msra.mxu0 0.0
    %476 = vmatprep.subr.mxu0 0.0
    %477 = vmatpush1.msra.mxu0 0.0
    %478 = vmatprep.subr.mxu0 0.0
    %479 = vmatpush1.msra.mxu0 0.0
    %480 = vmatprep.subr.mxu0 0.0
    %481 = vmatpush1.msra.mxu0 0.0
    %482 = vmatprep.subr.mxu0 0.0
    %483 = vmatpush1.msra.mxu0 0.0
    %484 = vmatprep.subr.mxu0 0.0
    %485 = vmatpush1.msra.mxu0 0.0
    %486 = vmatprep.subr.mxu0 0.0
    %487 = vmatpush1.msra.mxu0 0.0
    %488 = vmatprep.mubr.f32.mxu0 0.0
    %489 = vmatmul.mubr.f32.gmra.mrb[0].mxu0 %v400
    %v490 = vpop.f32.mrb[0].mxu0
    %v491 = vadd.f32 %v422, %v490
    %v492 = vpop.f32.mrb[0].mxu0
    %493 = vdwg.mxu0
    %v494 = vxor.u32 %v491, 2147483648
    %v495 = vmul.f32 %v494, 1.442695
    %v496 = vpow.pop %v495
    %v497 = vadd.f32 %v496, 1.0
    %v498 = vrcp.pop %v497
    %v499 = vmul.f32 1.0, %v498
    %500 = vst [vmem:[#allocation12] sm:$0xff] %v499
    // Predicated region
    $region58: #{tpu_custom_call.1} parent=1 // pred_check
      _
    $region59: #{tpu_custom_call.1} parent=1 // pred_check_branch
      %502 = sbr.rel (0) target = $region61
    $region60: #{tpu_custom_call.1} parent=1 // pred_region
      %s504 = ssub.s32 128, 128
      %505 = vsyncadd [#allocation4], %s504
      %s507 = sshll.u32 [#allocation11], 4
      %s508 = int_to_ptr.vmem [resolvable:$true] %s507
      %510 = dma.vmem_to_hbm [thread:$0]  %s508, 128, %s9, [#allocation4]
    $region61: #{tpu_custom_call.1} parent=1 // pred_fallthru
      _
    // Predicated region
    $region62: #{tpu_custom_call.1} parent=1 // pred_check
      _
    $region63: #{tpu_custom_call.1} parent=1 // pred_check_branch
      %512 = sbr.rel (0) target = $region65
    $region64: #{tpu_custom_call.1} parent=1 // pred_region
      %s514 = ssub.s32 128, 128
      %515 = vsyncadd [#allocation13], %s514
      %s517 = sshll.u32 [#allocation12], 4
      %s518 = int_to_ptr.vmem [resolvable:$true] %s517
      %520 = dma.vmem_to_hbm [thread:$0]  %s518, 128, %s10, [#allocation13]
    $region65: #{tpu_custom_call.1} parent=1 // pred_fallthru
      _
    // Predicated region
    $region66: #{tpu_custom_call.1} parent=1 // pred_check
      _
    $region67: #{tpu_custom_call.1} parent=1 // pred_check_branch
      %522 = sbr.rel (0) target = $region69
    $region68: #{tpu_custom_call.1} parent=1 // pred_region
      %523 = dma.done [#allocation4], 128
    $region69: #{tpu_custom_call.1} parent=1 // pred_fallthru
      _
    // Predicated region
    $region70: #{tpu_custom_call.1} parent=1 // pred_check
      _
    $region71: #{tpu_custom_call.1} parent=1 // pred_check_branch
      %525 = sbr.rel (0) target = $region73
    $region72: #{tpu_custom_call.1} parent=1 // pred_region
      %526 = dma.done [#allocation13], 128
    $region73: #{tpu_custom_call.1} parent=1 // pred_fallthru
      _
    %527 = vsyncpa [#allocation3], 1
    %528 = vsyncpa [#allocation6], 1
    %529 = vsyncpa [#allocation9], 1
    %530 = vsyncpa [#allocation4], 1
    %531 = vsyncpa [#allocation13], 1

</llo_original>
